<compile_context>
chip_gen: v6e
topology: v6e:2x2x1
jax: 0.10.0
libtpu: 0.0.40
codegen_flags: <defaults>
</compile_context>

<pallas_src>
import functools

import jax
import jax.numpy as jnp
from jax.experimental import pallas as pl
from jax.experimental.pallas import tpu as pltpu

EPS = 1e-5


# ---------------- fused Pallas kernel: conv1 + bn1 + relu + maxpool ----------------

def _fused_stem_kernel(be_ref, bo_ref, w_ref, shift_ref, o_ref, *,
                       KH, Wo, TP, Ho, Wp):
    # be_ref:    (1, 1, (2*TP+4)*Wo, KW*Cin) bf16  even padded-input rows, kw-unrolled
    # bo_ref:    (1, 1, (2*TP+3)*Wo, KW*Cin) bf16  odd  padded-input rows, kw-unrolled
    # w_ref:     (KH, KW*Cin, Cout)          bf16  BN scale already folded in
    # shift_ref: (1, Cout)                   f32
    # o_ref:     (1, TP, Wp, Cout)           bf16  pooled rows [t*TP, (t+1)*TP)
    t = pl.program_id(1)
    RC = 2 * TP + 1                      # conv rows computed this step
    MW = RC * Wo
    cout = o_ref.shape[-1]

    # ---- conv1 (BN scale folded into weights), MXU with f32 accumulation ----
    acc = jnp.zeros((MW, cout), jnp.float32)
    for kh in range(KH):
        a = kh // 2
        src = be_ref if kh % 2 == 0 else bo_ref
        xs = src[0, 0, a * Wo: a * Wo + MW, :]                    # (MW, KW*Cin) bf16
        acc = acc + jnp.dot(xs, w_ref[kh],
                            preferred_element_type=jnp.float32)

    # ---- + BN shift, ReLU (f32 epilogue, v5e-safe) ----
    y = jnp.maximum(acc + shift_ref[...], 0.0)                    # (MW, Cout) f32
    y3 = y.reshape(RC, Wo, cout)

    # Local conv row r is global row g = 2*t*TP - 1 + r; rows outside [0, Ho)
    # are the pool's zero padding (exact: everything is >= 0 after ReLU).
    g = 2 * TP * t - 1 + jax.lax.broadcasted_iota(jnp.int32, (RC, 1, 1), 0)
    y3 = jnp.where(jnp.logical_and(g >= 0, g < Ho), y3, 0.0)

    # ---- fused 3x3 stride-2 max pool ----
    # H direction: pooled row p takes local conv rows 2p, 2p+1, 2p+2.
    m01 = jnp.maximum(y3[0:RC - 1], y3[1:RC])                     # (2*TP, Wo, C)
    m01 = m01.reshape(TP, 2, Wo, cout)
    mh = jnp.maximum(m01[:, 0], m01[:, 1])                        # (TP, Wo, C)

    # W direction: pooled col q takes conv cols 2q-1, 2q, 2q+1 (zero padded).
    zc = jnp.zeros((TP, 1, cout), jnp.float32)
    mhp = jnp.concatenate([zc, mh, zc], axis=1)                   # (TP, Wo+2, C)
    n01 = jnp.maximum(mhp[:, 0:Wo + 1, :], mhp[:, 1:Wo + 2, :])   # (TP, Wo+1, C)
    n01 = n01[:, 0:2 * Wp, :].reshape(TP, Wp, 2, cout)
    mw = jnp.maximum(n01[:, :, 0, :], n01[:, :, 1, :])            # (TP, Wp, C)

    o_ref[0] = mw.astype(o_ref.dtype)


# ---------------- wrapper ----------------

def resnet18_front(x_nchw, conv_w, gamma, beta, run_mean, run_var, *, tile_hp=8):
    N, Cin, H, W = x_nchw.shape
    Cout, _, KH, KW = conv_w.shape          # (64, 3, 7, 7)
    stride, pad = 2, 3
    Ho = (H + 2 * pad - KH) // stride + 1
    Wo = (W + 2 * pad - KW) // stride + 1
    Hp = (Ho - 1) // 2 + 1                  # MaxPool2d(3, stride=2, padding=1)
    Wp = (Wo - 1) // 2 + 1

    TP = max(1, min(tile_hp, Hp))           # pooled rows per grid step
    n_tiles = -(-Hp // TP)
    Hp_pad = n_tiles * TP
    RC = 2 * TP + 1                         # conv rows per step
    RBe = RC + 3                            # even padded-input rows per step
    RBo = RC + 2                            # odd  padded-input rows per step

    # ---- conv1 operand prep (XLA glue, all in bf16: early cast halves the bytes) ----
    x = jnp.transpose(x_nchw, (0, 2, 3, 1)).astype(jnp.bfloat16)        # NHWC bf16
    pad_top = pad + 2                       # +2 parity-preserving rows so the pool's
                                            # "row above" of pooled row 0 exists
    rows_needed = 4 * Hp_pad + 7
    pad_bot = max(pad, rows_needed - (H + pad_top))
    xp = jnp.pad(x, ((0, 0), (pad_top, pad_bot), (pad, pad), (0, 0)))

    n_xpe = 2 * Hp_pad + 4
    n_xpo = 2 * Hp_pad + 3
    xpe = xp[:, 0:2 * n_xpe:2]              # even padded rows (N, n_xpe, Wpad, Cin)
    xpo = xp[:, 1:1 + 2 * n_xpo:2]          # odd  padded rows (N, n_xpo, Wpad, Cin)

    def kw_unroll(a):
        # (N, R, Wpad, Cin) -> (N, R, Wo, KW*Cin), column index k = kw*Cin + c
        taps = [a[:, :, kw:kw + 2 * Wo:2, :] for kw in range(KW)]
        t = jnp.stack(taps, axis=3)                                     # (N,R,Wo,KW,Cin)
        return t.reshape(N, a.shape[1], Wo, KW * Cin)

    be_full = kw_unroll(xpe)
    bo_full = kw_unroll(xpo)

    # Per-tile overlapping row windows (tiny halo duplication keeps BlockSpecs plain).
    be_t = jnp.stack([be_full[:, 2 * TP * t: 2 * TP * t + RBe]
                      for t in range(n_tiles)], axis=1)
    bo_t = jnp.stack([bo_full[:, 2 * TP * t: 2 * TP * t + RBo]
                      for t in range(n_tiles)], axis=1)
    be_t = be_t.reshape(N, n_tiles, RBe * Wo, KW * Cin)
    bo_t = bo_t.reshape(N, n_tiles, RBo * Wo, KW * Cin)

    # ---- fold BN (inference): scale into weights, shift kept for the epilogue ----
    inv_std = 1.0 / jnp.sqrt(run_var.astype(jnp.float32) + EPS)
    scale = gamma.astype(jnp.float32) * inv_std                          # (Cout,)
    shift = (beta.astype(jnp.float32)
             - run_mean.astype(jnp.float32) * scale).reshape(1, Cout)    # (1, Cout) f32
    wm = jnp.transpose(conv_w.astype(jnp.float32), (2, 3, 1, 0))         # (KH,KW,Cin,Cout)
    wm = (wm.reshape(KH, KW * Cin, Cout) * scale[None, None, :]).astype(jnp.bfloat16)

    kernel = functools.partial(_fused_stem_kernel,
                               KH=KH, Wo=Wo, TP=TP, Ho=Ho, Wp=Wp)
    pooled = pl.pallas_call(
        kernel,
        out_shape=jax.ShapeDtypeStruct((N, Hp_pad, Wp, Cout), jnp.bfloat16),
        grid=(N, n_tiles),
        in_specs=[
            pl.BlockSpec((1, 1, RBe * Wo, KW * Cin), lambda n, t: (n, t, 0, 0)),
            pl.BlockSpec((1, 1, RBo * Wo, KW * Cin), lambda n, t: (n, t, 0, 0)),
            pl.BlockSpec((KH, KW * Cin, Cout), lambda n, t: (0, 0, 0)),
            pl.BlockSpec((1, Cout), lambda n, t: (0, 0)),
        ],
        out_specs=pl.BlockSpec((1, TP, Wp, Cout), lambda n, t: (n, t, 0, 0)),
        compiler_params=pltpu.CompilerParams(
            dimension_semantics=("parallel", "parallel")),
    )(be_t, bo_t, wm, shift)

    out = pooled[:, :Hp]                                   # (N, Hp, Wp, Cout) bf16
    return jnp.transpose(out, (0, 3, 1, 2)).astype(jnp.float32)   # NCHW, f32


# ---------------- pure-JAX reference (correctness check) ----------------

def reference_front(x_nchw, conv_w, gamma, beta, run_mean, run_var):
    y = jax.lax.conv_general_dilated(
        x_nchw.astype(jnp.float32), conv_w.astype(jnp.float32),
        window_strides=(2, 2), padding=((3, 3), (3, 3)),
        dimension_numbers=("NCHW", "OIHW", "NCHW"),
        precision=jax.lax.Precision.HIGHEST)
    scale = gamma / jnp.sqrt(run_var + EPS)
    shift = beta - run_mean * scale
    y = y * scale[None, :, None, None] + shift[None, :, None, None]
    y = jnp.maximum(y, 0.0)
    y = jax.lax.reduce_window(
        y, -jnp.inf, jax.lax.max,
        window_dimensions=(1, 1, 3, 3), window_strides=(1, 1, 2, 2),
        padding=((0, 0), (0, 0), (1, 1), (1, 1)))
    return y


# ---------------- main ----------------

if __name__ == "__main__":
    key = jax.random.PRNGKey(0)
    k_x, k_w, k_g, k_b, k_m, k_v = jax.random.split(key, 6)

    # TODO(synk): torchvision pretrained conv1/bn1 weights cannot be loaded here
    # (no file/network access); random parameters with identical shapes stand in.
    N, Cin, H, W = 2, 3, 32, 32          # resnet18 conv1 requires 3 input channels
    Cout, KH, KW = 64, 7, 7

    x = jax.random.normal(k_x, (N, Cin, H, W), dtype=jnp.float32)
    conv_w = 0.05 * jax.random.normal(k_w, (Cout, Cin, KH, KW), dtype=jnp.float32)
    gamma = jax.random.uniform(k_g, (Cout,), minval=0.5, maxval=1.5,
                               dtype=jnp.float32)
    beta = 0.1 * jax.random.normal(k_b, (Cout,), dtype=jnp.float32)
    run_mean = 0.1 * jax.random.normal(k_m, (Cout,), dtype=jnp.float32)
    run_var = jax.random.uniform(k_v, (Cout,), minval=0.5, maxval=1.5,
                                 dtype=jnp.float32)

    # tile_hp=4 -> 2 pooled-row tiles per image: exercises the multi-tile path
    # and the top-boundary masking.
    out = jax.block_until_ready(
        resnet18_front(x, conv_w, gamma, beta, run_mean, run_var, tile_hp=4))
    ref = jax.block_until_ready(
        reference_front(x, conv_w, gamma, beta, run_mean, run_var))

    assert out.shape == (N, Cout, 8, 8), out.shape
    # bf16 operands / bf16 pooled storage with f32 accumulation:
    # expected error is a few 1e-3 relative; 2e-2 tolerance has ample margin.
    if not jnp.allclose(out, ref, atol=2e-2, rtol=2e-2):
        max_err = jnp.max(jnp.abs(out - ref))
        raise AssertionError(f"mismatch vs reference, max abs err = {max_err}")

    print("KERNEL_OK")
</pallas_src>

<mosaic_0001>
module attributes {stable_mosaic.version = 11 : i64} {
  func.func @_fused_stem_kernel(%arg0: i32, %arg1: i32, %arg2: memref<1x1x192x21xbf16, #tpu.memory_space<vmem>>, %arg3: memref<1x1x176x21xbf16, #tpu.memory_space<vmem>>, %arg4: memref<7x21x64xbf16, #tpu.memory_space<vmem>>, %arg5: memref<1x64xf32, #tpu.memory_space<vmem>>, %arg6: memref<1x4x8x64xbf16, #tpu.memory_space<vmem>>) attributes {dimension_semantics = [#tpu.dimension_semantics<parallel>, #tpu.dimension_semantics<parallel>], iteration_bounds = array<i64: 2, 2>, scalar_prefetch = 0 : i64, scratch_operands = 0 : i64, tpu.core_type = #tpu.core_type<tc>, window_params = [{transform_indices = @transform_0, window_bounds = array<i64: 1, 1, 192, 21>}, {transform_indices = @transform_1, window_bounds = array<i64: 1, 1, 176, 21>}, {pipeline_mode = #tpu.pipeline_mode<synchronous>, transform_indices = @transform_2, window_bounds = array<i64: 7, 21, 64>}, {pipeline_mode = #tpu.pipeline_mode<synchronous>, transform_indices = @transform_3, window_bounds = array<i64: 1, 64>}, {transform_indices = @transform_4, window_bounds = array<i64: 1, 4, 8, 64>}]} {
    %cst = arith.constant 0.000000e+00 : f32
    %0 = vector.broadcast %cst : f32 to vector<144x64xf32>
    %c0 = arith.constant 0 : index
    %c0_0 = arith.constant 0 : index
    %c0_1 = arith.constant 0 : index
    %c0_2 = arith.constant 0 : index
    %1 = vector.load %arg2[%c0, %c0_0, %c0_1, %c0_2] : memref<1x1x192x21xbf16, #tpu.memory_space<vmem>>, vector<1x1x144x21xbf16>
    %2 = vector.shape_cast %1 : vector<1x1x144x21xbf16> to vector<144x21xbf16>
    %c0_3 = arith.constant 0 : index
    %c0_4 = arith.constant 0 : index
    %c0_5 = arith.constant 0 : index
    %3 = vector.load %arg4[%c0_3, %c0_4, %c0_5] : memref<7x21x64xbf16, #tpu.memory_space<vmem>>, vector<1x21x64xbf16>
    %4 = vector.shape_cast %3 : vector<1x21x64xbf16> to vector<21x64xbf16>
    %cst_6 = arith.constant dense<0.000000e+00> : vector<144x64xf32>
    %5 = tpu.matmul %2, %4, %cst_6 {dimension_numbers = #tpu.dot_dimension_numbers<[1], [0], [0], [1], [0, 0, 1, 1], [], []>} : vector<144x21xbf16>, vector<21x64xbf16>, vector<144x64xf32> -> vector<144x64xf32>
    %6 = arith.addf %0, %5 : vector<144x64xf32>
    %c0_7 = arith.constant 0 : index
    %c0_8 = arith.constant 0 : index
    %c0_9 = arith.constant 0 : index
    %c0_10 = arith.constant 0 : index
    %7 = vector.load %arg3[%c0_7, %c0_8, %c0_9, %c0_10] : memref<1x1x176x21xbf16, #tpu.memory_space<vmem>>, vector<1x1x144x21xbf16>
    %8 = vector.shape_cast %7 : vector<1x1x144x21xbf16> to vector<144x21xbf16>
    %c1 = arith.constant 1 : index
    %c0_11 = arith.constant 0 : index
    %c0_12 = arith.constant 0 : index
    %9 = vector.load %arg4[%c1, %c0_11, %c0_12] : memref<7x21x64xbf16, #tpu.memory_space<vmem>>, vector<1x21x64xbf16>
    %10 = vector.shape_cast %9 : vector<1x21x64xbf16> to vector<21x64xbf16>
    %cst_13 = arith.constant dense<0.000000e+00> : vector<144x64xf32>
    %11 = tpu.matmul %8, %10, %cst_13 {dimension_numbers = #tpu.dot_dimension_numbers<[1], [0], [0], [1], [0, 0, 1, 1], [], []>} : vector<144x21xbf16>, vector<21x64xbf16>, vector<144x64xf32> -> vector<144x64xf32>
    %12 = arith.addf %6, %11 : vector<144x64xf32>
    %c0_14 = arith.constant 0 : index
    %c0_15 = arith.constant 0 : index
    %c16 = arith.constant 16 : index
    %c0_16 = arith.constant 0 : index
    %13 = vector.load %arg2[%c0_14, %c0_15, %c16, %c0_16] : memref<1x1x192x21xbf16, #tpu.memory_space<vmem>>, vector<1x1x144x21xbf16>
    %14 = vector.shape_cast %13 : vector<1x1x144x21xbf16> to vector<144x21xbf16>
    %c2 = arith.constant 2 : index
    %c0_17 = arith.constant 0 : index
    %c0_18 = arith.constant 0 : index
    %15 = vector.load %arg4[%c2, %c0_17, %c0_18] : memref<7x21x64xbf16, #tpu.memory_space<vmem>>, vector<1x21x64xbf16>
    %16 = vector.shape_cast %15 : vector<1x21x64xbf16> to vector<21x64xbf16>
    %cst_19 = arith.constant dense<0.000000e+00> : vector<144x64xf32>
    %17 = tpu.matmul %14, %16, %cst_19 {dimension_numbers = #tpu.dot_dimension_numbers<[1], [0], [0], [1], [0, 0, 1, 1], [], []>} : vector<144x21xbf16>, vector<21x64xbf16>, vector<144x64xf32> -> vector<144x64xf32>
    %18 = arith.addf %12, %17 : vector<144x64xf32>
    %c0_20 = arith.constant 0 : index
    %c0_21 = arith.constant 0 : index
    %c16_22 = arith.constant 16 : index
    %c0_23 = arith.constant 0 : index
    %19 = vector.load %arg3[%c0_20, %c0_21, %c16_22, %c0_23] : memref<1x1x176x21xbf16, #tpu.memory_space<vmem>>, vector<1x1x144x21xbf16>
    %20 = vector.shape_cast %19 : vector<1x1x144x21xbf16> to vector<144x21xbf16>
    %c3 = arith.constant 3 : index
    %c0_24 = arith.constant 0 : index
    %c0_25 = arith.constant 0 : index
    %21 = vector.load %arg4[%c3, %c0_24, %c0_25] : memref<7x21x64xbf16, #tpu.memory_space<vmem>>, vector<1x21x64xbf16>
    %22 = vector.shape_cast %21 : vector<1x21x64xbf16> to vector<21x64xbf16>
    %cst_26 = arith.constant dense<0.000000e+00> : vector<144x64xf32>
    %23 = tpu.matmul %20, %22, %cst_26 {dimension_numbers = #tpu.dot_dimension_numbers<[1], [0], [0], [1], [0, 0, 1, 1], [], []>} : vector<144x21xbf16>, vector<21x64xbf16>, vector<144x64xf32> -> vector<144x64xf32>
    %24 = arith.addf %18, %23 : vector<144x64xf32>
    %c0_27 = arith.constant 0 : index
    %c0_28 = arith.constant 0 : index
    %c32 = arith.constant 32 : index
    %c0_29 = arith.constant 0 : index
    %25 = vector.load %arg2[%c0_27, %c0_28, %c32, %c0_29] : memref<1x1x192x21xbf16, #tpu.memory_space<vmem>>, vector<1x1x144x21xbf16>
    %26 = vector.shape_cast %25 : vector<1x1x144x21xbf16> to vector<144x21xbf16>
    %c4 = arith.constant 4 : index
    %c0_30 = arith.constant 0 : index
    %c0_31 = arith.constant 0 : index
    %27 = vector.load %arg4[%c4, %c0_30, %c0_31] : memref<7x21x64xbf16, #tpu.memory_space<vmem>>, vector<1x21x64xbf16>
    %28 = vector.shape_cast %27 : vector<1x21x64xbf16> to vector<21x64xbf16>
    %cst_32 = arith.constant dense<0.000000e+00> : vector<144x64xf32>
    %29 = tpu.matmul %26, %28, %cst_32 {dimension_numbers = #tpu.dot_dimension_numbers<[1], [0], [0], [1], [0, 0, 1, 1], [], []>} : vector<144x21xbf16>, vector<21x64xbf16>, vector<144x64xf32> -> vector<144x64xf32>
    %30 = arith.addf %24, %29 : vector<144x64xf32>
    %c0_33 = arith.constant 0 : index
    %c0_34 = arith.constant 0 : index
    %c32_35 = arith.constant 32 : index
    %c0_36 = arith.constant 0 : index
    %31 = vector.load %arg3[%c0_33, %c0_34, %c32_35, %c0_36] : memref<1x1x176x21xbf16, #tpu.memory_space<vmem>>, vector<1x1x144x21xbf16>
    %32 = vector.shape_cast %31 : vector<1x1x144x21xbf16> to vector<144x21xbf16>
    %c5 = arith.constant 5 : index
    %c0_37 = arith.constant 0 : index
    %c0_38 = arith.constant 0 : index
    %33 = vector.load %arg4[%c5, %c0_37, %c0_38] : memref<7x21x64xbf16, #tpu.memory_space<vmem>>, vector<1x21x64xbf16>
    %34 = vector.shape_cast %33 : vector<1x21x64xbf16> to vector<21x64xbf16>
    %cst_39 = arith.constant dense<0.000000e+00> : vector<144x64xf32>
    %35 = tpu.matmul %32, %34, %cst_39 {dimension_numbers = #tpu.dot_dimension_numbers<[1], [0], [0], [1], [0, 0, 1, 1], [], []>} : vector<144x21xbf16>, vector<21x64xbf16>, vector<144x64xf32> -> vector<144x64xf32>
    %36 = arith.addf %30, %35 : vector<144x64xf32>
    %c0_40 = arith.constant 0 : index
    %c0_41 = arith.constant 0 : index
    %c48 = arith.constant 48 : index
    %c0_42 = arith.constant 0 : index
    %37 = vector.load %arg2[%c0_40, %c0_41, %c48, %c0_42] : memref<1x1x192x21xbf16, #tpu.memory_space<vmem>>, vector<1x1x144x21xbf16>
    %38 = vector.shape_cast %37 : vector<1x1x144x21xbf16> to vector<144x21xbf16>
    %c6 = arith.constant 6 : index
    %c0_43 = arith.constant 0 : index
    %c0_44 = arith.constant 0 : index
    %39 = vector.load %arg4[%c6, %c0_43, %c0_44] : memref<7x21x64xbf16, #tpu.memory_space<vmem>>, vector<1x21x64xbf16>
    %40 = vector.shape_cast %39 : vector<1x21x64xbf16> to vector<21x64xbf16>
    %cst_45 = arith.constant dense<0.000000e+00> : vector<144x64xf32>
    %41 = tpu.matmul %38, %40, %cst_45 {dimension_numbers = #tpu.dot_dimension_numbers<[1], [0], [0], [1], [0, 0, 1, 1], [], []>} : vector<144x21xbf16>, vector<21x64xbf16>, vector<144x64xf32> -> vector<144x64xf32>
    %42 = arith.addf %36, %41 : vector<144x64xf32>
    %c0_46 = arith.constant 0 : index
    %c0_47 = arith.constant 0 : index
    %43 = vector.load %arg5[%c0_46, %c0_47] : memref<1x64xf32, #tpu.memory_space<vmem>>, vector<1x64xf32>
    %44 = vector.broadcast %43 : vector<1x64xf32> to vector<144x64xf32>
    %45 = arith.addf %42, %44 : vector<144x64xf32>
    %cst_48 = arith.constant 0.000000e+00 : f32
    %46 = vector.broadcast %cst_48 : f32 to vector<144x64xf32>
    %47 = arith.maximumf %45, %46 : vector<144x64xf32>
    %48 = vector.shape_cast %47 : vector<144x64xf32> to vector<9x16x64xf32>
    %c8_i32 = arith.constant 8 : i32
    %49 = arith.muli %c8_i32, %arg1 : i32
    %c1_i32 = arith.constant 1 : i32
    %50 = arith.subi %49, %c1_i32 : i32
    %51 = tpu.iota {dimensions = array<i32: 0>} : vector<9x1x1xi32>
    %52 = vector.broadcast %50 : i32 to vector<9x1x1xi32>
    %53 = arith.addi %52, %51 : vector<9x1x1xi32>
    %c0_i32 = arith.constant 0 : i32
    %54 = vector.broadcast %c0_i32 : i32 to vector<9x1x1xi32>
    %55 = arith.cmpi sge, %53, %54 : vector<9x1x1xi32>
    %c16_i32 = arith.constant 16 : i32
    %56 = vector.broadcast %c16_i32 : i32 to vector<9x1x1xi32>
    %57 = arith.cmpi slt, %53, %56 : vector<9x1x1xi32>
    %58 = arith.andi %55, %57 : vector<9x1x1xi1>
    %cst_49 = arith.constant 0.000000e+00 : f32
    %59 = vector.shape_cast %58 : vector<9x1x1xi1> to vector<9x1x1xi1>
    %60 = vector.broadcast %59 : vector<9x1x1xi1> to vector<9x16x64xi1>
    %61 = vector.broadcast %cst_49 : f32 to vector<9x16x64xf32>
    %62 = arith.select %60, %48, %61 : vector<9x16x64xi1>, vector<9x16x64xf32>
    %63 = vector.extract_strided_slice %62 {offsets = [0, 0, 0], sizes = [8, 16, 64], strides = [1, 1, 1]} : vector<9x16x64xf32> to vector<8x16x64xf32>
    %64 = vector.extract_strided_slice %62 {offsets = [1, 0, 0], sizes = [8, 16, 64], strides = [1, 1, 1]} : vector<9x16x64xf32> to vector<8x16x64xf32>
    %65 = arith.maximumf %63, %64 : vector<8x16x64xf32>
    %66 = vector.shape_cast %65 : vector<8x16x64xf32> to vector<4x2x16x64xf32>
    %67 = vector.extract_strided_slice %66 {offsets = [0, 0, 0, 0], sizes = [4, 1, 16, 64], strides = [1, 1, 1, 1]} : vector<4x2x16x64xf32> to vector<4x1x16x64xf32>
    %68 = vector.shape_cast %67 : vector<4x1x16x64xf32> to vector<4x16x64xf32>
    %69 = vector.extract_strided_slice %66 {offsets = [0, 1, 0, 0], sizes = [4, 1, 16, 64], strides = [1, 1, 1, 1]} : vector<4x2x16x64xf32> to vector<4x1x16x64xf32>
    %70 = vector.shape_cast %69 : vector<4x1x16x64xf32> to vector<4x16x64xf32>
    %71 = arith.maximumf %68, %70 : vector<4x16x64xf32>
    %cst_50 = arith.constant 0.000000e+00 : f32
    %72 = vector.broadcast %cst_50 : f32 to vector<4x1x64xf32>
    %73 = tpu.concatenate %72, %71, %72 in 1 : vector<4x1x64xf32>, vector<4x16x64xf32>, vector<4x1x64xf32> -> vector<4x18x64xf32>
    %74 = vector.extract_strided_slice %73 {offsets = [0, 0, 0], sizes = [4, 17, 64], strides = [1, 1, 1]} : vector<4x18x64xf32> to vector<4x17x64xf32>
    %75 = vector.extract_strided_slice %73 {offsets = [0, 1, 0], sizes = [4, 17, 64], strides = [1, 1, 1]} : vector<4x18x64xf32> to vector<4x17x64xf32>
    %76 = arith.maximumf %74, %75 : vector<4x17x64xf32>
    %77 = vector.extract_strided_slice %76 {offsets = [0, 0, 0], sizes = [4, 16, 64], strides = [1, 1, 1]} : vector<4x17x64xf32> to vector<4x16x64xf32>
    %78 = vector.shape_cast %77 : vector<4x16x64xf32> to vector<4x8x2x64xf32>
    %79 = vector.extract_strided_slice %78 {offsets = [0, 0, 0, 0], sizes = [4, 8, 1, 64], strides = [1, 1, 1, 1]} : vector<4x8x2x64xf32> to vector<4x8x1x64xf32>
    %80 = vector.shape_cast %79 : vector<4x8x1x64xf32> to vector<4x8x64xf32>
    %81 = vector.extract_strided_slice %78 {offsets = [0, 0, 1, 0], sizes = [4, 8, 1, 64], strides = [1, 1, 1, 1]} : vector<4x8x2x64xf32> to vector<4x8x1x64xf32>
    %82 = vector.shape_cast %81 : vector<4x8x1x64xf32> to vector<4x8x64xf32>
    %83 = arith.maximumf %80, %82 : vector<4x8x64xf32>
    %84 = arith.truncf %83 : vector<4x8x64xf32> to vector<4x8x64xbf16>
    %c0_51 = arith.constant 0 : index
    %c0_52 = arith.constant 0 : index
    %c0_53 = arith.constant 0 : index
    %c0_54 = arith.constant 0 : index
    %85 = vector.load %arg6[%c0_51, %c0_52, %c0_53, %c0_54] : memref<1x4x8x64xbf16, #tpu.memory_space<vmem>>, vector<1x4x8x64xbf16>
    %86 = vector.shape_cast %85 : vector<1x4x8x64xbf16> to vector<4x8x64xbf16>
    %87 = vector.shape_cast %84 : vector<4x8x64xbf16> to vector<1x4x8x64xbf16>
    tpu.vector_store %arg6[%c0_51, %c0_52, %c0_53, %c0_54], %87 {strides = array<i32>} : memref<1x4x8x64xbf16, #tpu.memory_space<vmem>>, vector<1x4x8x64xbf16>,
    return
  }
  func.func @transform_0(%arg0: i32, %arg1: i32) -> (i32, i32, i32, i32) {
    %c0_i32 = arith.constant 0 : i32
    %c0_i32_0 = arith.constant 0 : i32
    %c0_i32_1 = arith.constant 0 : i32
    return %arg0, %arg1, %c0_i32, %c0_i32_0 : i32, i32, i32, i32
  }
  func.func @transform_1(%arg0: i32, %arg1: i32) -> (i32, i32, i32, i32) {
    %c0_i32 = arith.constant 0 : i32
    %c0_i32_0 = arith.constant 0 : i32
    %c0_i32_1 = arith.constant 0 : i32
    return %arg0, %arg1, %c0_i32, %c0_i32_0 : i32, i32, i32, i32
  }
  func.func @transform_2(%arg0: i32, %arg1: i32) -> (i32, i32, i32) {
    %c0_i32 = arith.constant 0 : i32
    %c0_i32_0 = arith.constant 0 : i32
    %c0_i32_1 = arith.constant 0 : i32
    %c0_i32_2 = arith.constant 0 : i32
    return %c0_i32, %c0_i32_0, %c0_i32_1 : i32, i32, i32
  }
  func.func @transform_3(%arg0: i32, %arg1: i32) -> (i32, i32) {
    %c0_i32 = arith.constant 0 : i32
    %c0_i32_0 = arith.constant 0 : i32
    %c0_i32_1 = arith.constant 0 : i32
    return %c0_i32, %c0_i32_0 : i32, i32
  }
  func.func @transform_4(%arg0: i32, %arg1: i32) -> (i32, i32, i32, i32) {
    %c0_i32 = arith.constant 0 : i32
    %c0_i32_0 = arith.constant 0 : i32
    %c0_i32_1 = arith.constant 0 : i32
    return %arg0, %arg1, %c0_i32, %c0_i32_0 : i32, i32, i32, i32
  }
}

</mosaic_0001>

<llo_original>
// kernel: tpu_custom_call.1
$region0: #{tpu_custom_call.1}
  #allocation0 [shape = 'u32[]', space=smem, size = 0x4, offset = 0x4, fixed_abs, tag = 'smem constant byte address 0x4 - core index']
  #allocation1 [shape = 'u32[144,128]{1,0:T(1,128)}', space=vmem, size = 0x12000, scoped, tag = 'internal scratch']
  %s0 = inlined_call_operand.vmem [shape: bf16[2,2,192,21], index: 0, kind: input, shape index: {}]
  %s1 = inlined_call_operand.vmem [shape: bf16[2,2,176,21], index: 1, kind: input, shape index: {}]
  %s2 = inlined_call_operand.vmem [shape: bf16[7,21,64], index: 2, kind: input, shape index: {}]
  %s3 = inlined_call_operand.vmem [shape: f32[1,64], index: 3, kind: input, shape index: {}]
  %s4 = inlined_call_operand.hbm [shape: bf16[2,8,8,64], index: 4, kind: output, shape index: {}]
  %s5 = sld [smem:[#allocation0]]
  $region49: #{tpu_custom_call.1} parent=0
    _
  %s7 = ssub.s32 1, %s5
  %s8 = scalar_select 0, %s7, %s5
  $region1: #{tpu_custom_call.1} parent=0
    #allocation2 [shape = 'u8[16384]{0}', space=vmem, size = 0x4000, scoped, tag = 'output window, operand 0']
    #allocation3 [shape = 's32[2]{0}', space=sflag, size = 0x8, scoped, tag = 'scoped memory for tpu_custom_call.1']
    %9 = vsyncpa [#allocation3], 0
    %s10 = scalar_lea.sflag [#allocation3], 1
    %11 = vsyncpa %s10, 0
    loop: start=0, step=1, limit=6
    $region2: #{tpu_custom_call.1} parent=1 // loop_pre_header
      _
    $region3: #{tpu_custom_call.1} parent=1 // loop_header
      %s13 = sphi 0, %s17
      %p14 = scmp.ge.s32.totalorder %s13, 6
      %s20 = sphi 0, %s32
      %s21 = sphi 0, %s28
      %s22 = sphi 0, %s20
      %s23 = sphi 0, %s21
      %s24 = sphi 0, %s22
      %s25 = sphi 0, %s23
      %s37 = sphi 0, %s39
      %s40 = sphi 0, %s37
      %s41 = sphi 0, %s40
      %s57 = sphi 0, %s41
      %s65 = sphi 0, %s67
      %s68 = sphi 0, %s65
      %s69 = sphi 0, %s68
      %s85 = sphi 0, %s69
      %s89 = sphi 0, %s89
      %s91 = sphi 0, %s89
      %s92 = sphi 0, %s91
      %s106 = sphi 0, %s92
      %s110 = sphi 0, %s110
      %s112 = sphi 0, %s110
      %s113 = sphi 0, %s112
      %s127 = sphi 0, %s113
      %s135 = sphi 0, %s137
      %s138 = sphi 0, %s135
      %s139 = sphi 0, %s138
      %s155 = sphi 0, %s139
    $region4: #{tpu_custom_call.1} parent=1 // loop_header_branch
      %16 = sbr.rel (%p14) target = $region8
    $region5: #{tpu_custom_call.1} parent=1 // loop_body
      %s18 = ssub.s32 %s13, 1
      %s19 = ssub.s32 %s13, 2
      %s26 = sadd.s32 1, %s21
      %p27 = scmp.ge.s32.totalorder %s26, 2
      %s28 = scalar_select %p27, 0, %s26
      %s29 = sadd.s32 1, %s20
      %s30 = scalar_select %p27, %s29, %s20
      %p31 = scmp.ge.s32.totalorder %s30, 2
      %s32 = scalar_select %p31, 0, %s30
      %s33 = ssub.s32 %s20, %s32
      %s34 = ssub.s32 %s21, %s28
      %s35 = sor.u32 %s33, %s34
      %p36 = scmp.eq.s32.totalorder %s35, 0
      %s38 = sadd.s32 %s37, 1
      %s39 = scalar_select %p36, %s37, %s38
      %p42 = pneg %p36
      %p43 = scmp.eq.s32.totalorder %s13, 3
      %p44 = por %p42, %p43
      %p45 = scmp.ne.s32.totalorder %s37, %s40
      %p46 = scmp.eq.s32.totalorder %s13, 0
      %p47 = por %p45, %p46
      %p48 = scmp.ne.s32.totalorder %s37, %s40
      %p49 = scmp.eq.s32.totalorder %s18, 3
      %p50 = por %p48, %p49
      %p51 = scmp.ne.s32.totalorder %s40, %s41
      %p52 = scmp.eq.s32.totalorder %s18, 0
      %p53 = por %p51, %p52
      %p54 = scmp.ne.s32.totalorder %s40, %s41
      %p55 = scmp.eq.s32.totalorder %s19, 3
      %p56 = por %p54, %p55
      %p58 = scmp.ne.s32.totalorder %s41, %s57
      %p59 = scmp.eq.s32.totalorder %s19, 0
      %p60 = por %p58, %p59
      %s61 = ssub.s32 %s20, %s32
      %s62 = ssub.s32 %s21, %s28
      %s63 = sor.u32 %s61, %s62
      %p64 = scmp.eq.s32.totalorder %s63, 0
      %s66 = sadd.s32 %s65, 1
      %s67 = scalar_select %p64, %s65, %s66
      %p70 = pneg %p64
      %p71 = scmp.eq.s32.totalorder %s13, 3
      %p72 = por %p70, %p71
      %p73 = scmp.ne.s32.totalorder %s65, %s68
      %p74 = scmp.eq.s32.totalorder %s13, 0
      %p75 = por %p73, %p74
      %p76 = scmp.ne.s32.totalorder %s65, %s68
      %p77 = scmp.eq.s32.totalorder %s18, 3
      %p78 = por %p76, %p77
      %p79 = scmp.ne.s32.totalorder %s68, %s69
      %p80 = scmp.eq.s32.totalorder %s18, 0
      %p81 = por %p79, %p80
      %p82 = scmp.ne.s32.totalorder %s68, %s69
      %p83 = scmp.eq.s32.totalorder %s19, 3
      %p84 = por %p82, %p83
      %p86 = scmp.ne.s32.totalorder %s69, %s85
      %p87 = scmp.eq.s32.totalorder %s19, 0
      %p88 = por %p86, %p87
      %s90 = sadd.s32 %s89, 1
      %p93 = scmp.eq.s32.totalorder %s13, 3
      %p94 = scmp.ne.s32.totalorder %s89, %s91
      %p95 = scmp.eq.s32.totalorder %s13, 0
      %p96 = por %p94, %p95
      %p97 = scmp.ne.s32.totalorder %s89, %s91
      %p98 = scmp.eq.s32.totalorder %s18, 3
      %p99 = por %p97, %p98
      %p100 = scmp.ne.s32.totalorder %s91, %s92
      %p101 = scmp.eq.s32.totalorder %s18, 0
      %p102 = por %p100, %p101
      %p103 = scmp.ne.s32.totalorder %s91, %s92
      %p104 = scmp.eq.s32.totalorder %s19, 3
      %p105 = por %p103, %p104
      %p107 = scmp.ne.s32.totalorder %s92, %s106
      %p108 = scmp.eq.s32.totalorder %s19, 0
      %p109 = por %p107, %p108
      %s111 = sadd.s32 %s110, 1
      %p114 = scmp.eq.s32.totalorder %s13, 3
      %p115 = scmp.ne.s32.totalorder %s110, %s112
      %p116 = scmp.eq.s32.totalorder %s13, 0
      %p117 = por %p115, %p116
      %p118 = scmp.ne.s32.totalorder %s110, %s112
      %p119 = scmp.eq.s32.totalorder %s18, 3
      %p120 = por %p118, %p119
      %p121 = scmp.ne.s32.totalorder %s112, %s113
      %p122 = scmp.eq.s32.totalorder %s18, 0
      %p123 = por %p121, %p122
      %p124 = scmp.ne.s32.totalorder %s112, %s113
      %p125 = scmp.eq.s32.totalorder %s19, 3
      %p126 = por %p124, %p125
      %p128 = scmp.ne.s32.totalorder %s113, %s127
      %p129 = scmp.eq.s32.totalorder %s19, 0
      %p130 = por %p128, %p129
      %s131 = ssub.s32 %s20, %s32
      %s132 = ssub.s32 %s21, %s28
      %s133 = sor.u32 %s131, %s132
      %p134 = scmp.eq.s32.totalorder %s133, 0
      %s136 = sadd.s32 %s135, 1
      %s137 = scalar_select %p134, %s135, %s136
      %p140 = pneg %p134
      %p141 = scmp.eq.s32.totalorder %s13, 3
      %p142 = por %p140, %p141
      %p143 = scmp.ne.s32.totalorder %s135, %s138
      %p144 = scmp.eq.s32.totalorder %s13, 0
      %p145 = por %p143, %p144
      %p146 = scmp.ne.s32.totalorder %s135, %s138
      %p147 = scmp.eq.s32.totalorder %s18, 3
      %p148 = por %p146, %p147
      %p149 = scmp.ne.s32.totalorder %s138, %s139
      %p150 = scmp.eq.s32.totalorder %s18, 0
      %p151 = por %p149, %p150
      %p152 = scmp.ne.s32.totalorder %s138, %s139
      %p153 = scmp.eq.s32.totalorder %s19, 3
      %p154 = por %p152, %p153
      %p156 = scmp.ne.s32.totalorder %s139, %s155
      %p157 = scmp.eq.s32.totalorder %s19, 0
      %p158 = por %p156, %p157
      %p159 = scmp.le.s32.totalorder 1, %s13
      %p160 = scmp.lt.s32.totalorder %s13, 5
      %p161 = pnand %p159, %p160
      %p162 = pneg %p161
      // Predicated region
      $region9: #{tpu_custom_call.1} parent=5 // pred_check
        _
      $region10: #{tpu_custom_call.1} parent=5 // pred_check_branch
        %164 = sbr.rel (%p161) target = $region12
      $region11: #{tpu_custom_call.1} parent=5 // pred_region
        %s165 = ssub.s32 %s13, 1
        // Predicated region
        $region13: #{tpu_custom_call.1} parent=11 // pred_check
          %p166 = pneg %p102
        $region14: #{tpu_custom_call.1} parent=11 // pred_check_branch
          %168 = sbr.rel (%p166) target = $region16
        $region15: #{tpu_custom_call.1} parent=11 // pred_region
          _
        $region16: #{tpu_custom_call.1} parent=11 // pred_fallthru
          _
        // Predicated region
        $region17: #{tpu_custom_call.1} parent=11 // pred_check
          %p169 = pneg %p123
        $region18: #{tpu_custom_call.1} parent=11 // pred_check_branch
          %171 = sbr.rel (%p169) target = $region20
        $region19: #{tpu_custom_call.1} parent=11 // pred_region
          _
        $region20: #{tpu_custom_call.1} parent=11 // pred_fallthru
          _
      $region12: #{tpu_custom_call.1} parent=5 // pred_fallthru
        _
      %p172 = scmp.lt.s32.totalorder %s13, 4
      // Predicated region
      $region21: #{tpu_custom_call.1} parent=5 // pred_check
        %p173 = pneg %p172
      $region22: #{tpu_custom_call.1} parent=5 // pred_check_branch
        %175 = sbr.rel (%p173) target = $region24
      $region23: #{tpu_custom_call.1} parent=5 // pred_region
        // Predicated region
        $region25: #{tpu_custom_call.1} parent=23 // pred_check
          %p176 = pneg %p47
        $region26: #{tpu_custom_call.1} parent=23 // pred_check_branch
          %178 = sbr.rel (%p176) target = $region28
        $region27: #{tpu_custom_call.1} parent=23 // pred_region
          %p179 = scmp.lt.s32.totalorder %s20, 1
          %s180 = scalar_select %p179, %s20, 1
          %p181 = scmp.lt.s32.totalorder %s21, 1
          %s182 = scalar_select %p181, %s21, 1
          %s183 = smul.addr %s182, 24
          %s184 = smul.addr %s180, 48
          %s185 = sadd.s32 %s183, %s184
          %s186 = smul.addr %s185, 4
          %s187 = scalar_lea.vmem %s0, %s186
        $region28: #{tpu_custom_call.1} parent=23 // pred_fallthru
          _
        // Predicated region
        $region29: #{tpu_custom_call.1} parent=23 // pred_check
          %p188 = pneg %p75
        $region30: #{tpu_custom_call.1} parent=23 // pred_check_branch
          %190 = sbr.rel (%p188) target = $region32
        $region31: #{tpu_custom_call.1} parent=23 // pred_region
          %p191 = scmp.lt.s32.totalorder %s20, 1
          %s192 = scalar_select %p191, %s20, 1
          %p193 = scmp.lt.s32.totalorder %s21, 1
          %s194 = scalar_select %p193, %s21, 1
          %s195 = smul.addr %s194, 22
          %s196 = smul.addr %s192, 44
          %s197 = sadd.s32 %s195, %s196
          %s198 = smul.addr %s197, 4
          %s199 = scalar_lea.vmem %s1, %s198
        $region32: #{tpu_custom_call.1} parent=23 // pred_fallthru
          _
      $region24: #{tpu_custom_call.1} parent=5 // pred_fallthru
        _
      %p200 = scmp.le.s32.totalorder 1, %s13
      %p201 = scmp.lt.s32.totalorder %s13, 5
      %p202 = pnand %p200, %p201
      %p203 = pneg %p202
      // Predicated region
      $region33: #{tpu_custom_call.1} parent=5 // pred_check
        _
      $region34: #{tpu_custom_call.1} parent=5 // pred_check_branch
        %205 = sbr.rel (%p202) target = $region36
      $region35: #{tpu_custom_call.1} parent=5 // pred_region
        %s206 = ssub.s32 %s13, 1
        %p207 = scmp.lt.s32.totalorder %s22, 1
        %s208 = scalar_select %p207, %s22, 1
        %p209 = scmp.lt.s32.totalorder %s23, 1
        %s210 = scalar_select %p209, %s23, 1
        %s211 = smul.addr %s210, 24
        %s212 = smul.addr %s208, 48
        %s213 = sadd.s32 %s211, %s212
        %s214 = smul.addr %s213, 4
        %s215 = scalar_lea.vmem %s0, %s214
        %p216 = pneg %p53
        %p217 = pneg %p50
        %p218 = scmp.lt.s32.totalorder %s22, 1
        %s219 = scalar_select %p218, %s22, 1
        %p220 = scmp.lt.s32.totalorder %s23, 1
        %s221 = scalar_select %p220, %s23, 1
        %s222 = smul.addr %s221, 22
        %s223 = smul.addr %s219, 44
        %s224 = sadd.s32 %s222, %s223
        %s225 = smul.addr %s224, 4
        %s226 = scalar_lea.vmem %s1, %s225
        %p227 = pneg %p81
        %p228 = pneg %p78
        %p229 = pneg %p102
        %p230 = pneg %p99
        %p231 = pneg %p123
        %p232 = pneg %p120
        %p233 = pneg %p151
        %p234 = pneg %p148
        %s235 = sand.u32 %s138, 1
        %s236 = scalar_lea.sflag [#allocation3], %s235
        %s237 = sand.u32 %s138, 1
        %s238 = smul.addr %s237, 16
        %s239 = scalar_lea.vmem [#allocation2], %s238
        %p240 = scmp.lt.s32.totalorder %s22, 1
        %s241 = scalar_select %p240, %s22, 1
        %p242 = scmp.lt.s32.totalorder %s23, 1
        %s243 = scalar_select %p242, %s23, 1
        %s244 = smul.addr %s243, 24
        %s245 = smul.addr %s241, 48
        %s246 = sadd.s32 %s244, %s245
        %s247 = smul.addr %s246, 4
        %s248 = scalar_lea.vmem %s0, %s247
        %p249 = scmp.lt.s32.totalorder %s22, 1
        %s250 = scalar_select %p249, %s22, 1
        %p251 = scmp.lt.s32.totalorder %s23, 1
        %s252 = scalar_select %p251, %s23, 1
        %s253 = smul.addr %s252, 22
        %s254 = smul.addr %s250, 44
        %s255 = sadd.s32 %s253, %s254
        %s256 = smul.addr %s255, 4
        %s257 = scalar_lea.vmem %s1, %s256
        %s258 = smul.u32 4, %s23
        %v260 = vld [vmem:[%s248] sm:$0xf]
        %v261 = vld [vmem:[%s248 + $0x4] sm:$0xf]
        %v262 = vld [vmem:[%s248 + $0x8] sm:$0xf]
        %v263 = vld [vmem:[%s248 + $0xc] sm:$0xf]
        %v264 = vld [vmem:[%s248 + $0x10] sm:$0xf]
        %v265 = vld [vmem:[%s248 + $0x14] sm:$0xf]
        %v266 = vld [vmem:[%s248 + $0x18] sm:$0xf]
        %v267 = vld [vmem:[%s248 + $0x1c] sm:$0xf]
        %v268 = vld [vmem:[%s248 + $0x20] sm:$0xf]
        %v269 = vld [vmem:[%s248 + $0x24] sm:$0xf]
        %v270 = vld [vmem:[%s248 + $0x28] sm:$0xf]
        %v271 = vld [vmem:[%s248 + $0x2c] sm:$0xf]
        %v272 = vld [vmem:[%s248 + $0x30] sm:$0xf]
        %v273 = vld [vmem:[%s248 + $0x34] sm:$0xf]
        %v274 = vld [vmem:[%s248 + $0x38] sm:$0xf]
        %v275 = vld [vmem:[%s248 + $0x3c] sm:$0xf]
        %v276 = vld [vmem:[%s248 + $0x40] sm:$0xf]
        %v277 = vld [vmem:[%s248 + $0x44] sm:$0xf]
        %v278 = vld [vmem:[%s2] sm:$0xf]
        %v279 = vld [vmem:[%s2 + $0x4] sm:$0xf]
        %v280 = vld [vmem:[%s2 + $0x8] sm:$0x7]
        %v281 = vld [vmem:[%s257] sm:$0xf]
        %v282 = vld [vmem:[%s257 + $0x4] sm:$0xf]
        %v283 = vld [vmem:[%s257 + $0x8] sm:$0xf]
        %v284 = vld [vmem:[%s257 + $0xc] sm:$0xf]
        %v285 = vld [vmem:[%s257 + $0x10] sm:$0xf]
        %v286 = vld [vmem:[%s257 + $0x14] sm:$0xf]
        %v287 = vld [vmem:[%s257 + $0x18] sm:$0xf]
        %v288 = vld [vmem:[%s257 + $0x1c] sm:$0xf]
        %v289 = vld [vmem:[%s257 + $0x20] sm:$0xf]
        %v290 = vld [vmem:[%s257 + $0x24] sm:$0xf]
        %v291 = vld [vmem:[%s257 + $0x28] sm:$0xf]
        %v292 = vld [vmem:[%s257 + $0x2c] sm:$0xf]
        %v293 = vld [vmem:[%s257 + $0x30] sm:$0xf]
        %v294 = vld [vmem:[%s257 + $0x34] sm:$0xf]
        %v295 = vld [vmem:[%s257 + $0x38] sm:$0xf]
        %v296 = vld [vmem:[%s257 + $0x3c] sm:$0xf]
        %v297 = vld [vmem:[%s257 + $0x40] sm:$0xf]
        %v298 = vld [vmem:[%s257 + $0x44] sm:$0xf]
        %s299 = scalar_lea.vmem %s2, 12
        %v300 = vld [vmem:[%s299] sm:$0xf]
        %v301 = vld [vmem:[%s299 + $0x4] sm:$0xf]
        %v302 = vld [vmem:[%s299 + $0x8] sm:$0x7]
        %v321 = vunpack.c.l.b16 %v281
        %v322 = vunpack.c.l.b16 %v282
        %v323 = vunpack.c.l.b16 %v283
        %v324 = vunpack.c.l.b16 %v284
        %v325 = vunpack.c.l.b16 %v285
        %v326 = vunpack.c.l.b16 %v286
        %v327 = vunpack.c.l.b16 %v287
        %v328 = vunpack.c.l.b16 %v288
        %v329 = vunpack.c.l.b16 %v289
        %v330 = vunpack.c.l.b16 %v290
        %v331 = vunpack.c.l.b16 %v291
        %v332 = vunpack.c.l.b16 %v292
        %v333 = vunpack.c.l.b16 %v293
        %v334 = vunpack.c.l.b16 %v294
        %v335 = vunpack.c.l.b16 %v295
        %v336 = vunpack.c.l.b16 %v296
        %v337 = vunpack.c.l.b16 %v297
        %v338 = vunpack.c.l.b16 %v298
        %v339 = vpack.c.b16 %v322, %v321
        %v340 = vpack.c.b16 %v324, %v323
        %v341 = vpack.c.b16 %v326, %v325
        %v342 = vpack.c.b16 %v328, %v327
        %v343 = vpack.c.b16 %v330, %v329
        %v344 = vpack.c.b16 %v332, %v331
        %v345 = vpack.c.b16 %v334, %v333
        %v346 = vpack.c.b16 %v336, %v335
        %v347 = vpack.c.b16 %v338, %v337
        %v351 = vunpack.c.l.b16 %v300
        %v352 = vunpack.c.l.b16 %v301
        %v353 = vunpack.c.l.b16 %v302
        %v354 = vpack.c.b16 %v352, %v351
        %v355 = vpack.c.b16 %v353, %v353
        %vm357 = vcmask 171008
        %v359 = vsel %vm357, %v339, 0
        %v362 = vsel %vm357, %v340, 0
        %v365 = vsel %vm357, %v341, 0
        %v368 = vsel %vm357, %v342, 0
        %v371 = vsel %vm357, %v343, 0
        %v374 = vsel %vm357, %v344, 0
        %v377 = vsel %vm357, %v345, 0
        %v380 = vsel %vm357, %v346, 0
        %v383 = vsel %vm357, %v347, 0
        %vm385 = vcmask 1041408
        %vm386 = vcmask 1042432
        %v387 = vsel %vm385, 4294967295, 65535
        %v388 = vsel %vm386, %v387, 0
        %v390 = vand.u32 %v355, %v388
        %392 = vmatprep.subr.bf16.mxu0 0
        %393 = vmatpush1.bf16.msra.mxu0 0
        %394 = vmatprep.subr.bf16.mxu0 0
        %395 = vmatpush1.bf16.msra.mxu0 0
        %396 = vmatprep.subr.bf16.mxu0 0
        %397 = vmatpush1.bf16.msra.mxu0 0
        %398 = vmatprep.subr.bf16.mxu0 0
        %399 = vmatpush1.bf16.msra.mxu0 0
        %400 = vmatprep.subr.bf16.mxu0 0
        %401 = vmatpush1.bf16.msra.mxu0 0
        %402 = vmatprep.subr.bf16.mxu0 0
        %403 = vmatpush1.bf16.msra.mxu0 0
        %404 = vmatprep.subr.bf16.mxu0 0
        %405 = vmatpush1.bf16.msra.mxu0 %v390
        %406 = vmatprep.subr.bf16.mxu0 0
        %407 = vmatpush1.bf16.msra.mxu0 %v354
        %408 = vmatprep.subr.bf16.mxu0 0
        %409 = vmatpush2.bf16.msra.mxu0 0
        %410 = vmatprep.subr.bf16.mxu0 0
        %411 = vmatpush2.bf16.msra.mxu0 0
        %412 = vmatprep.subr.bf16.mxu0 0
        %413 = vmatpush2.bf16.msra.mxu0 0
        %414 = vmatprep.subr.bf16.mxu0 0
        %415 = vmatpush2.bf16.msra.mxu0 0
        %416 = vmatprep.subr.bf16.mxu0 0
        %417 = vmatpush2.bf16.msra.mxu0 0
        %418 = vmatprep.subr.bf16.mxu0 0
        %419 = vmatpush2.bf16.msra.mxu0 0
        %420 = vmatprep.subr.bf16.mxu0 0
        %421 = vmatpush2.bf16.msra.mxu0 0
        %422 = vmatprep.subr.bf16.mxu0 0
        %423 = vmatpush2.bf16.msra.mxu0 0
        %424 = vmatprep.mubr.bf16.mxu0 0
        %425 = vmatmul.mubr.bf16.gmra.mxu0 %v359
        %v426 = vpop.f32.mrf.mxu0
        %v427 = vadd.f32 0.0, %v426
        %v428 = vpop.f32.mrf.mxu0
        %v429 = vpop.f32.mrf.mxu0
        %v430 = vadd.f32 0.0, %v429
        %v431 = vpop.f32.mrf.mxu0
        %432 = vmatprep.mubr.bf16.mxu0 0
        %433 = vmatmul.mubr.bf16.gmra.mxu0 %v362
        %v434 = vpop.f32.mrf.mxu0
        %v435 = vadd.f32 0.0, %v434
        %v436 = vpop.f32.mrf.mxu0
        %v437 = vpop.f32.mrf.mxu0
        %v438 = vadd.f32 0.0, %v437
        %v439 = vpop.f32.mrf.mxu0
        %440 = vmatprep.mubr.bf16.mxu0 0
        %441 = vmatmul.mubr.bf16.gmra.mxu0 %v365
        %v442 = vpop.f32.mrf.mxu0
        %v443 = vadd.f32 0.0, %v442
        %v444 = vpop.f32.mrf.mxu0
        %v445 = vpop.f32.mrf.mxu0
        %v446 = vadd.f32 0.0, %v445
        %v447 = vpop.f32.mrf.mxu0
        %448 = vmatprep.mubr.bf16.mxu0 0
        %449 = vmatmul.mubr.bf16.gmra.mxu0 %v368
        %v450 = vpop.f32.mrf.mxu0
        %v451 = vadd.f32 0.0, %v450
        %v452 = vpop.f32.mrf.mxu0
        %v453 = vpop.f32.mrf.mxu0
        %v454 = vadd.f32 0.0, %v453
        %v455 = vpop.f32.mrf.mxu0
        %456 = vmatprep.mubr.bf16.mxu0 0
        %457 = vmatmul.mubr.bf16.gmra.mxu0 %v371
        %v458 = vpop.f32.mrf.mxu0
        %v459 = vadd.f32 0.0, %v458
        %v460 = vpop.f32.mrf.mxu0
        %v461 = vpop.f32.mrf.mxu0
        %v462 = vadd.f32 0.0, %v461
        %v463 = vpop.f32.mrf.mxu0
        %464 = vmatprep.mubr.bf16.mxu0 0
        %465 = vmatmul.mubr.bf16.gmra.mxu0 %v374
        %v466 = vpop.f32.mrf.mxu0
        %v467 = vadd.f32 0.0, %v466
        %v468 = vpop.f32.mrf.mxu0
        %v469 = vpop.f32.mrf.mxu0
        %v470 = vadd.f32 0.0, %v469
        %v471 = vpop.f32.mrf.mxu0
        %472 = vmatprep.mubr.bf16.mxu0 0
        %473 = vmatmul.mubr.bf16.gmra.mxu0 %v377
        %v474 = vpop.f32.mrf.mxu0
        %v475 = vadd.f32 0.0, %v474
        %v476 = vpop.f32.mrf.mxu0
        %v477 = vpop.f32.mrf.mxu0
        %v478 = vadd.f32 0.0, %v477
        %v479 = vpop.f32.mrf.mxu0
        %480 = vmatprep.mubr.bf16.mxu0 0
        %481 = vmatmul.mubr.bf16.gmra.mxu0 %v380
        %v482 = vpop.f32.mrf.mxu0
        %v483 = vadd.f32 0.0, %v482
        %v484 = vpop.f32.mrf.mxu0
        %v485 = vpop.f32.mrf.mxu0
        %v486 = vadd.f32 0.0, %v485
        %v487 = vpop.f32.mrf.mxu0
        %488 = vmatprep.mubr.bf16.mxu0 0
        %489 = vmatmul.mubr.bf16.gmra.mxu0 %v383
        %v490 = vpop.f32.mrf.mxu0
        %v491 = vadd.f32 0.0, %v490
        %v492 = vpop.f32.mrf.mxu0
        %v493 = vpop.f32.mrf.mxu0
        %v494 = vadd.f32 0.0, %v493
        %v495 = vpop.f32.mrf.mxu0
        %496 = vdwg.mxu0
        %v515 = vunpack.c.l.b16 %v260
        %v516 = vunpack.c.l.b16 %v261
        %v517 = vunpack.c.l.b16 %v262
        %v518 = vunpack.c.l.b16 %v263
        %v519 = vunpack.c.l.b16 %v264
        %v520 = vunpack.c.l.b16 %v265
        %v521 = vunpack.c.l.b16 %v266
        %v522 = vunpack.c.l.b16 %v267
        %v523 = vunpack.c.l.b16 %v268
        %v524 = vunpack.c.l.b16 %v269
        %v525 = vunpack.c.l.b16 %v270
        %v526 = vunpack.c.l.b16 %v271
        %v527 = vunpack.c.l.b16 %v272
        %v528 = vunpack.c.l.b16 %v273
        %v529 = vunpack.c.l.b16 %v274
        %v530 = vunpack.c.l.b16 %v275
        %v531 = vunpack.c.l.b16 %v276
        %v532 = vunpack.c.l.b16 %v277
        %v533 = vpack.c.b16 %v516, %v515
        %v534 = vpack.c.b16 %v518, %v517
        %v535 = vpack.c.b16 %v520, %v519
        %v536 = vpack.c.b16 %v522, %v521
        %v537 = vpack.c.b16 %v524, %v523
        %v538 = vpack.c.b16 %v526, %v525
        %v539 = vpack.c.b16 %v528, %v527
        %v540 = vpack.c.b16 %v530, %v529
        %v541 = vpack.c.b16 %v532, %v531
        %v545 = vunpack.c.l.b16 %v278
        %v546 = vunpack.c.l.b16 %v279
        %v547 = vunpack.c.l.b16 %v280
        %v548 = vpack.c.b16 %v546, %v545
        %v549 = vpack.c.b16 %v547, %v547
        %v552 = vsel %vm357, %v533, 0
        %v555 = vsel %vm357, %v534, 0
        %v558 = vsel %vm357, %v535, 0
        %v561 = vsel %vm357, %v536, 0
        %v564 = vsel %vm357, %v537, 0
        %v567 = vsel %vm357, %v538, 0
        %v570 = vsel %vm357, %v539, 0
        %v573 = vsel %vm357, %v540, 0
        %v576 = vsel %vm357, %v541, 0
        %v579 = vand.u32 %v549, %v388
        %581 = vmatprep.subr.bf16.mxu0 0
        %582 = vmatpush1.bf16.msra.mxu0 0
        %583 = vmatprep.subr.bf16.mxu0 0
        %584 = vmatpush1.bf16.msra.mxu0 0
        %585 = vmatprep.subr.bf16.mxu0 0
        %586 = vmatpush1.bf16.msra.mxu0 0
        %587 = vmatprep.subr.bf16.mxu0 0
        %588 = vmatpush1.bf16.msra.mxu0 0
        %589 = vmatprep.subr.bf16.mxu0 0
        %590 = vmatpush1.bf16.msra.mxu0 0
        %591 = vmatprep.subr.bf16.mxu0 0
        %592 = vmatpush1.bf16.msra.mxu0 0
        %593 = vmatprep.subr.bf16.mxu0 0
        %594 = vmatpush1.bf16.msra.mxu0 %v579
        %595 = vmatprep.subr.bf16.mxu0 0
        %596 = vmatpush1.bf16.msra.mxu0 %v548
        %597 = vmatprep.subr.bf16.mxu0 0
        %598 = vmatpush2.bf16.msra.mxu0 0
        %599 = vmatprep.subr.bf16.mxu0 0
        %600 = vmatpush2.bf16.msra.mxu0 0
        %601 = vmatprep.subr.bf16.mxu0 0
        %602 = vmatpush2.bf16.msra.mxu0 0
        %603 = vmatprep.subr.bf16.mxu0 0
        %604 = vmatpush2.bf16.msra.mxu0 0
        %605 = vmatprep.subr.bf16.mxu0 0
        %606 = vmatpush2.bf16.msra.mxu0 0
        %607 = vmatprep.subr.bf16.mxu0 0
        %608 = vmatpush2.bf16.msra.mxu0 0
        %609 = vmatprep.subr.bf16.mxu0 0
        %610 = vmatpush2.bf16.msra.mxu0 0
        %611 = vmatprep.subr.bf16.mxu0 0
        %612 = vmatpush2.bf16.msra.mxu0 0
        %613 = vmatprep.mubr.bf16.mxu0 0
        %614 = vmatmul.mubr.bf16.gmra.mxu0 %v552
        %v615 = vpop.f32.mrf.mxu0
        %v616 = vadd.f32 %v427, %v615
        %v617 = vpop.f32.mrf.mxu0
        %v618 = vpop.f32.mrf.mxu0
        %v619 = vadd.f32 %v430, %v618
        %v620 = vpop.f32.mrf.mxu0
        %621 = vmatprep.mubr.bf16.mxu0 0
        %622 = vmatmul.mubr.bf16.gmra.mxu0 %v555
        %v623 = vpop.f32.mrf.mxu0
        %v624 = vadd.f32 %v435, %v623
        %v625 = vpop.f32.mrf.mxu0
        %v626 = vpop.f32.mrf.mxu0
        %v627 = vadd.f32 %v438, %v626
        %v628 = vpop.f32.mrf.mxu0
        %629 = vmatprep.mubr.bf16.mxu0 0
        %630 = vmatmul.mubr.bf16.gmra.mxu0 %v558
        %v631 = vpop.f32.mrf.mxu0
        %v632 = vadd.f32 %v443, %v631
        %v633 = vpop.f32.mrf.mxu0
        %v634 = vpop.f32.mrf.mxu0
        %v635 = vadd.f32 %v446, %v634
        %v636 = vpop.f32.mrf.mxu0
        %637 = vmatprep.mubr.bf16.mxu0 0
        %638 = vmatmul.mubr.bf16.gmra.mxu0 %v561
        %v639 = vpop.f32.mrf.mxu0
        %v640 = vadd.f32 %v451, %v639
        %v641 = vpop.f32.mrf.mxu0
        %v642 = vpop.f32.mrf.mxu0
        %v643 = vadd.f32 %v454, %v642
        %v644 = vpop.f32.mrf.mxu0
        %645 = vmatprep.mubr.bf16.mxu0 0
        %646 = vmatmul.mubr.bf16.gmra.mxu0 %v564
        %v647 = vpop.f32.mrf.mxu0
        %v648 = vadd.f32 %v459, %v647
        %v649 = vpop.f32.mrf.mxu0
        %v650 = vpop.f32.mrf.mxu0
        %v651 = vadd.f32 %v462, %v650
        %v652 = vpop.f32.mrf.mxu0
        %653 = vmatprep.mubr.bf16.mxu0 0
        %654 = vmatmul.mubr.bf16.gmra.mxu0 %v567
        %v655 = vpop.f32.mrf.mxu0
        %v656 = vadd.f32 %v467, %v655
        %v657 = vpop.f32.mrf.mxu0
        %v658 = vpop.f32.mrf.mxu0
        %v659 = vadd.f32 %v470, %v658
        %v660 = vpop.f32.mrf.mxu0
        %661 = vmatprep.mubr.bf16.mxu0 0
        %662 = vmatmul.mubr.bf16.gmra.mxu0 %v570
        %v663 = vpop.f32.mrf.mxu0
        %v664 = vadd.f32 %v475, %v663
        %v665 = vpop.f32.mrf.mxu0
        %v666 = vpop.f32.mrf.mxu0
        %v667 = vadd.f32 %v478, %v666
        %v668 = vpop.f32.mrf.mxu0
        %669 = vmatprep.mubr.bf16.mxu0 0
        %670 = vmatmul.mubr.bf16.gmra.mxu0 %v573
        %v671 = vpop.f32.mrf.mxu0
        %v672 = vadd.f32 %v483, %v671
        %v673 = vpop.f32.mrf.mxu0
        %v674 = vpop.f32.mrf.mxu0
        %v675 = vadd.f32 %v486, %v674
        %v676 = vpop.f32.mrf.mxu0
        %677 = vmatprep.mubr.bf16.mxu0 0
        %678 = vmatmul.mubr.bf16.gmra.mxu0 %v576
        %v679 = vpop.f32.mrf.mxu0
        %v680 = vadd.f32 %v491, %v679
        %v681 = vpop.f32.mrf.mxu0
        %v682 = vpop.f32.mrf.mxu0
        %v683 = vadd.f32 %v494, %v682
        %v684 = vpop.f32.mrf.mxu0
        %685 = vdwg.mxu0
        %v686 = vld [vmem:[%s248 + $0x8] sm:$0xf]
        %v687 = vld [vmem:[%s248 + $0xc] sm:$0xf]
        %v688 = vld [vmem:[%s248 + $0x10] sm:$0xf]
        %v689 = vld [vmem:[%s248 + $0x14] sm:$0xf]
        %v690 = vld [vmem:[%s248 + $0x18] sm:$0xf]
        %v691 = vld [vmem:[%s248 + $0x1c] sm:$0xf]
        %v692 = vld [vmem:[%s248 + $0x20] sm:$0xf]
        %v693 = vld [vmem:[%s248 + $0x24] sm:$0xf]
        %v694 = vld [vmem:[%s248 + $0x28] sm:$0xf]
        %v695 = vld [vmem:[%s248 + $0x2c] sm:$0xf]
        %v696 = vld [vmem:[%s248 + $0x30] sm:$0xf]
        %v697 = vld [vmem:[%s248 + $0x34] sm:$0xf]
        %v698 = vld [vmem:[%s248 + $0x38] sm:$0xf]
        %v699 = vld [vmem:[%s248 + $0x3c] sm:$0xf]
        %v700 = vld [vmem:[%s248 + $0x40] sm:$0xf]
        %v701 = vld [vmem:[%s248 + $0x44] sm:$0xf]
        %v702 = vld [vmem:[%s248 + $0x48] sm:$0xf]
        %v703 = vld [vmem:[%s248 + $0x4c] sm:$0xf]
        %s704 = scalar_lea.vmem %s2, 24
        %v705 = vld [vmem:[%s704] sm:$0xf]
        %v706 = vld [vmem:[%s704 + $0x4] sm:$0xf]
        %v707 = vld [vmem:[%s704 + $0x8] sm:$0x7]
        %v726 = vunpack.c.l.b16 %v686
        %v727 = vunpack.c.l.b16 %v687
        %v728 = vunpack.c.l.b16 %v688
        %v729 = vunpack.c.l.b16 %v689
        %v730 = vunpack.c.l.b16 %v690
        %v731 = vunpack.c.l.b16 %v691
        %v732 = vunpack.c.l.b16 %v692
        %v733 = vunpack.c.l.b16 %v693
        %v734 = vunpack.c.l.b16 %v694
        %v735 = vunpack.c.l.b16 %v695
        %v736 = vunpack.c.l.b16 %v696
        %v737 = vunpack.c.l.b16 %v697
        %v738 = vunpack.c.l.b16 %v698
        %v739 = vunpack.c.l.b16 %v699
        %v740 = vunpack.c.l.b16 %v700
        %v741 = vunpack.c.l.b16 %v701
        %v742 = vunpack.c.l.b16 %v702
        %v743 = vunpack.c.l.b16 %v703
        %v744 = vpack.c.b16 %v727, %v726
        %v745 = vpack.c.b16 %v729, %v728
        %v746 = vpack.c.b16 %v731, %v730
        %v747 = vpack.c.b16 %v733, %v732
        %v748 = vpack.c.b16 %v735, %v734
        %v749 = vpack.c.b16 %v737, %v736
        %v750 = vpack.c.b16 %v739, %v738
        %v751 = vpack.c.b16 %v741, %v740
        %v752 = vpack.c.b16 %v743, %v742
        %v756 = vunpack.c.l.b16 %v705
        %v757 = vunpack.c.l.b16 %v706
        %v758 = vunpack.c.l.b16 %v707
        %v759 = vpack.c.b16 %v757, %v756
        %v760 = vpack.c.b16 %v758, %v758
        %v763 = vsel %vm357, %v744, 0
        %v766 = vsel %vm357, %v745, 0
        %v769 = vsel %vm357, %v746, 0
        %v772 = vsel %vm357, %v747, 0
        %v775 = vsel %vm357, %v748, 0
        %v778 = vsel %vm357, %v749, 0
        %v781 = vsel %vm357, %v750, 0
        %v784 = vsel %vm357, %v751, 0
        %v787 = vsel %vm357, %v752, 0
        %v790 = vand.u32 %v760, %v388
        %792 = vmatprep.subr.bf16.mxu0 0
        %793 = vmatpush1.bf16.msra.mxu0 0
        %794 = vmatprep.subr.bf16.mxu0 0
        %795 = vmatpush1.bf16.msra.mxu0 0
        %796 = vmatprep.subr.bf16.mxu0 0
        %797 = vmatpush1.bf16.msra.mxu0 0
        %798 = vmatprep.subr.bf16.mxu0 0
        %799 = vmatpush1.bf16.msra.mxu0 0
        %800 = vmatprep.subr.bf16.mxu0 0
        %801 = vmatpush1.bf16.msra.mxu0 0
        %802 = vmatprep.subr.bf16.mxu0 0
        %803 = vmatpush1.bf16.msra.mxu0 0
        %804 = vmatprep.subr.bf16.mxu0 0
        %805 = vmatpush1.bf16.msra.mxu0 %v790
        %806 = vmatprep.subr.bf16.mxu0 0
        %807 = vmatpush1.bf16.msra.mxu0 %v759
        %808 = vmatprep.subr.bf16.mxu0 0
        %809 = vmatpush2.bf16.msra.mxu0 0
        %810 = vmatprep.subr.bf16.mxu0 0
        %811 = vmatpush2.bf16.msra.mxu0 0
        %812 = vmatprep.subr.bf16.mxu0 0
        %813 = vmatpush2.bf16.msra.mxu0 0
        %814 = vmatprep.subr.bf16.mxu0 0
        %815 = vmatpush2.bf16.msra.mxu0 0
        %816 = vmatprep.subr.bf16.mxu0 0
        %817 = vmatpush2.bf16.msra.mxu0 0
        %818 = vmatprep.subr.bf16.mxu0 0
        %819 = vmatpush2.bf16.msra.mxu0 0
        %820 = vmatprep.subr.bf16.mxu0 0
        %821 = vmatpush2.bf16.msra.mxu0 0
        %822 = vmatprep.subr.bf16.mxu0 0
        %823 = vmatpush2.bf16.msra.mxu0 0
        %824 = vmatprep.mubr.bf16.mxu0 0
        %825 = vmatmul.mubr.bf16.gmra.mxu0 %v763
        %v826 = vpop.f32.mrf.mxu0
        %v827 = vadd.f32 0.0, %v826
        %v828 = vpop.f32.mrf.mxu0
        %v829 = vpop.f32.mrf.mxu0
        %v830 = vadd.f32 0.0, %v829
        %v831 = vpop.f32.mrf.mxu0
        %832 = vmatprep.mubr.bf16.mxu0 0
        %833 = vmatmul.mubr.bf16.gmra.mxu0 %v766
        %v834 = vpop.f32.mrf.mxu0
        %v835 = vadd.f32 0.0, %v834
        %v836 = vpop.f32.mrf.mxu0
        %v837 = vpop.f32.mrf.mxu0
        %v838 = vadd.f32 0.0, %v837
        %v839 = vpop.f32.mrf.mxu0
        %840 = vmatprep.mubr.bf16.mxu0 0
        %841 = vmatmul.mubr.bf16.gmra.mxu0 %v769
        %v842 = vpop.f32.mrf.mxu0
        %v843 = vadd.f32 0.0, %v842
        %v844 = vpop.f32.mrf.mxu0
        %v845 = vpop.f32.mrf.mxu0
        %v846 = vadd.f32 0.0, %v845
        %v847 = vpop.f32.mrf.mxu0
        %848 = vmatprep.mubr.bf16.mxu0 0
        %849 = vmatmul.mubr.bf16.gmra.mxu0 %v772
        %v850 = vpop.f32.mrf.mxu0
        %v851 = vadd.f32 0.0, %v850
        %v852 = vpop.f32.mrf.mxu0
        %v853 = vpop.f32.mrf.mxu0
        %v854 = vadd.f32 0.0, %v853
        %v855 = vpop.f32.mrf.mxu0
        %856 = vmatprep.mubr.bf16.mxu0 0
        %857 = vmatmul.mubr.bf16.gmra.mxu0 %v775
        %v858 = vpop.f32.mrf.mxu0
        %v859 = vadd.f32 0.0, %v858
        %v860 = vpop.f32.mrf.mxu0
        %v861 = vpop.f32.mrf.mxu0
        %v862 = vadd.f32 0.0, %v861
        %v863 = vpop.f32.mrf.mxu0
        %864 = vmatprep.mubr.bf16.mxu0 0
        %865 = vmatmul.mubr.bf16.gmra.mxu0 %v778
        %v866 = vpop.f32.mrf.mxu0
        %v867 = vadd.f32 0.0, %v866
        %v868 = vpop.f32.mrf.mxu0
        %v869 = vpop.f32.mrf.mxu0
        %v870 = vadd.f32 0.0, %v869
        %v871 = vpop.f32.mrf.mxu0
        %872 = vmatprep.mubr.bf16.mxu0 0
        %873 = vmatmul.mubr.bf16.gmra.mxu0 %v781
        %v874 = vpop.f32.mrf.mxu0
        %v875 = vadd.f32 0.0, %v874
        %v876 = vpop.f32.mrf.mxu0
        %v877 = vpop.f32.mrf.mxu0
        %v878 = vadd.f32 0.0, %v877
        %v879 = vpop.f32.mrf.mxu0
        %880 = vmatprep.mubr.bf16.mxu0 0
        %881 = vmatmul.mubr.bf16.gmra.mxu0 %v784
        %v882 = vpop.f32.mrf.mxu0
        %v883 = vadd.f32 0.0, %v882
        %v884 = vpop.f32.mrf.mxu0
        %v885 = vpop.f32.mrf.mxu0
        %v886 = vadd.f32 0.0, %v885
        %v887 = vpop.f32.mrf.mxu0
        %888 = vmatprep.mubr.bf16.mxu0 0
        %889 = vmatmul.mubr.bf16.gmra.mxu0 %v787
        %v890 = vpop.f32.mrf.mxu0
        %v891 = vadd.f32 0.0, %v890
        %v892 = vpop.f32.mrf.mxu0
        %v893 = vpop.f32.mrf.mxu0
        %v894 = vadd.f32 0.0, %v893
        %v895 = vpop.f32.mrf.mxu0
        %896 = vdwg.mxu0
        %v897 = vadd.f32 %v616, %v827
        %v898 = vadd.f32 %v619, %v830
        %v899 = vadd.f32 %v624, %v835
        %v900 = vadd.f32 %v627, %v838
        %v901 = vadd.f32 %v632, %v843
        %v902 = vadd.f32 %v635, %v846
        %v903 = vadd.f32 %v640, %v851
        %v904 = vadd.f32 %v643, %v854
        %v905 = vadd.f32 %v648, %v859
        %v906 = vadd.f32 %v651, %v862
        %v907 = vadd.f32 %v656, %v867
        %v908 = vadd.f32 %v659, %v870
        %v909 = vadd.f32 %v664, %v875
        %v910 = vadd.f32 %v667, %v878
        %v911 = vadd.f32 %v672, %v883
        %v912 = vadd.f32 %v675, %v886
        %v913 = vadd.f32 %v680, %v891
        %v914 = vadd.f32 %v683, %v894
        %v915 = vld [vmem:[%s257 + $0x8] sm:$0xf]
        %v916 = vld [vmem:[%s257 + $0xc] sm:$0xf]
        %v917 = vld [vmem:[%s257 + $0x10] sm:$0xf]
        %v918 = vld [vmem:[%s257 + $0x14] sm:$0xf]
        %v919 = vld [vmem:[%s257 + $0x18] sm:$0xf]
        %v920 = vld [vmem:[%s257 + $0x1c] sm:$0xf]
        %v921 = vld [vmem:[%s257 + $0x20] sm:$0xf]
        %v922 = vld [vmem:[%s257 + $0x24] sm:$0xf]
        %v923 = vld [vmem:[%s257 + $0x28] sm:$0xf]
        %v924 = vld [vmem:[%s257 + $0x2c] sm:$0xf]
        %v925 = vld [vmem:[%s257 + $0x30] sm:$0xf]
        %v926 = vld [vmem:[%s257 + $0x34] sm:$0xf]
        %v927 = vld [vmem:[%s257 + $0x38] sm:$0xf]
        %v928 = vld [vmem:[%s257 + $0x3c] sm:$0xf]
        %v929 = vld [vmem:[%s257 + $0x40] sm:$0xf]
        %v930 = vld [vmem:[%s257 + $0x44] sm:$0xf]
        %v931 = vld [vmem:[%s257 + $0x48] sm:$0xf]
        %v932 = vld [vmem:[%s257 + $0x4c] sm:$0xf]
        %s933 = scalar_lea.vmem %s2, 36
        %v934 = vld [vmem:[%s933] sm:$0xf]
        %v935 = vld [vmem:[%s933 + $0x4] sm:$0xf]
        %v936 = vld [vmem:[%s933 + $0x8] sm:$0x7]
        %v955 = vunpack.c.l.b16 %v915
        %v956 = vunpack.c.l.b16 %v916
        %v957 = vunpack.c.l.b16 %v917
        %v958 = vunpack.c.l.b16 %v918
        %v959 = vunpack.c.l.b16 %v919
        %v960 = vunpack.c.l.b16 %v920
        %v961 = vunpack.c.l.b16 %v921
        %v962 = vunpack.c.l.b16 %v922
        %v963 = vunpack.c.l.b16 %v923
        %v964 = vunpack.c.l.b16 %v924
        %v965 = vunpack.c.l.b16 %v925
        %v966 = vunpack.c.l.b16 %v926
        %v967 = vunpack.c.l.b16 %v927
        %v968 = vunpack.c.l.b16 %v928
        %v969 = vunpack.c.l.b16 %v929
        %v970 = vunpack.c.l.b16 %v930
        %v971 = vunpack.c.l.b16 %v931
        %v972 = vunpack.c.l.b16 %v932
        %v973 = vpack.c.b16 %v956, %v955
        %v974 = vpack.c.b16 %v958, %v957
        %v975 = vpack.c.b16 %v960, %v959
        %v976 = vpack.c.b16 %v962, %v961
        %v977 = vpack.c.b16 %v964, %v963
        %v978 = vpack.c.b16 %v966, %v965
        %v979 = vpack.c.b16 %v968, %v967
        %v980 = vpack.c.b16 %v970, %v969
        %v981 = vpack.c.b16 %v972, %v971
        %v985 = vunpack.c.l.b16 %v934
        %v986 = vunpack.c.l.b16 %v935
        %v987 = vunpack.c.l.b16 %v936
        %v988 = vpack.c.b16 %v986, %v985
        %v989 = vpack.c.b16 %v987, %v987
        %v992 = vsel %vm357, %v973, 0
        %v995 = vsel %vm357, %v974, 0
        %v998 = vsel %vm357, %v975, 0
        %v1001 = vsel %vm357, %v976, 0
        %v1004 = vsel %vm357, %v977, 0
        %v1007 = vsel %vm357, %v978, 0
        %v1010 = vsel %vm357, %v979, 0
        %v1013 = vsel %vm357, %v980, 0
        %v1016 = vsel %vm357, %v981, 0
        %v1019 = vand.u32 %v989, %v388
        %1021 = vmatprep.subr.bf16.mxu0 0
        %1022 = vmatpush1.bf16.msra.mxu0 0
        %1023 = vmatprep.subr.bf16.mxu0 0
        %1024 = vmatpush1.bf16.msra.mxu0 0
        %1025 = vmatprep.subr.bf16.mxu0 0
        %1026 = vmatpush1.bf16.msra.mxu0 0
        %1027 = vmatprep.subr.bf16.mxu0 0
        %1028 = vmatpush1.bf16.msra.mxu0 0
        %1029 = vmatprep.subr.bf16.mxu0 0
        %1030 = vmatpush1.bf16.msra.mxu0 0
        %1031 = vmatprep.subr.bf16.mxu0 0
        %1032 = vmatpush1.bf16.msra.mxu0 0
        %1033 = vmatprep.subr.bf16.mxu0 0
        %1034 = vmatpush1.bf16.msra.mxu0 %v1019
        %1035 = vmatprep.subr.bf16.mxu0 0
        %1036 = vmatpush1.bf16.msra.mxu0 %v988
        %1037 = vmatprep.subr.bf16.mxu0 0
        %1038 = vmatpush2.bf16.msra.mxu0 0
        %1039 = vmatprep.subr.bf16.mxu0 0
        %1040 = vmatpush2.bf16.msra.mxu0 0
        %1041 = vmatprep.subr.bf16.mxu0 0
        %1042 = vmatpush2.bf16.msra.mxu0 0
        %1043 = vmatprep.subr.bf16.mxu0 0
        %1044 = vmatpush2.bf16.msra.mxu0 0
        %1045 = vmatprep.subr.bf16.mxu0 0
        %1046 = vmatpush2.bf16.msra.mxu0 0
        %1047 = vmatprep.subr.bf16.mxu0 0
        %1048 = vmatpush2.bf16.msra.mxu0 0
        %1049 = vmatprep.subr.bf16.mxu0 0
        %1050 = vmatpush2.bf16.msra.mxu0 0
        %1051 = vmatprep.subr.bf16.mxu0 0
        %1052 = vmatpush2.bf16.msra.mxu0 0
        %1053 = vmatprep.mubr.bf16.mxu0 0
        %1054 = vmatmul.mubr.bf16.gmra.mxu0 %v992
        %v1055 = vpop.f32.mrf.mxu0
        %v1056 = vadd.f32 0.0, %v1055
        %v1057 = vpop.f32.mrf.mxu0
        %v1058 = vpop.f32.mrf.mxu0
        %v1059 = vadd.f32 0.0, %v1058
        %v1060 = vpop.f32.mrf.mxu0
        %1061 = vmatprep.mubr.bf16.mxu0 0
        %1062 = vmatmul.mubr.bf16.gmra.mxu0 %v995
        %v1063 = vpop.f32.mrf.mxu0
        %v1064 = vadd.f32 0.0, %v1063
        %v1065 = vpop.f32.mrf.mxu0
        %v1066 = vpop.f32.mrf.mxu0
        %v1067 = vadd.f32 0.0, %v1066
        %v1068 = vpop.f32.mrf.mxu0
        %1069 = vmatprep.mubr.bf16.mxu0 0
        %1070 = vmatmul.mubr.bf16.gmra.mxu0 %v998
        %v1071 = vpop.f32.mrf.mxu0
        %v1072 = vadd.f32 0.0, %v1071
        %v1073 = vpop.f32.mrf.mxu0
        %v1074 = vpop.f32.mrf.mxu0
        %v1075 = vadd.f32 0.0, %v1074
        %v1076 = vpop.f32.mrf.mxu0
        %1077 = vmatprep.mubr.bf16.mxu0 0
        %1078 = vmatmul.mubr.bf16.gmra.mxu0 %v1001
        %v1079 = vpop.f32.mrf.mxu0
        %v1080 = vadd.f32 0.0, %v1079
        %v1081 = vpop.f32.mrf.mxu0
        %v1082 = vpop.f32.mrf.mxu0
        %v1083 = vadd.f32 0.0, %v1082
        %v1084 = vpop.f32.mrf.mxu0
        %1085 = vmatprep.mubr.bf16.mxu0 0
        %1086 = vmatmul.mubr.bf16.gmra.mxu0 %v1004
        %v1087 = vpop.f32.mrf.mxu0
        %v1088 = vadd.f32 0.0, %v1087
        %v1089 = vpop.f32.mrf.mxu0
        %v1090 = vpop.f32.mrf.mxu0
        %v1091 = vadd.f32 0.0, %v1090
        %v1092 = vpop.f32.mrf.mxu0
        %1093 = vmatprep.mubr.bf16.mxu0 0
        %1094 = vmatmul.mubr.bf16.gmra.mxu0 %v1007
        %v1095 = vpop.f32.mrf.mxu0
        %v1096 = vadd.f32 0.0, %v1095
        %v1097 = vpop.f32.mrf.mxu0
        %v1098 = vpop.f32.mrf.mxu0
        %v1099 = vadd.f32 0.0, %v1098
        %v1100 = vpop.f32.mrf.mxu0
        %1101 = vmatprep.mubr.bf16.mxu0 0
        %1102 = vmatmul.mubr.bf16.gmra.mxu0 %v1010
        %v1103 = vpop.f32.mrf.mxu0
        %v1104 = vadd.f32 0.0, %v1103
        %v1105 = vpop.f32.mrf.mxu0
        %v1106 = vpop.f32.mrf.mxu0
        %v1107 = vadd.f32 0.0, %v1106
        %v1108 = vpop.f32.mrf.mxu0
        %1109 = vmatprep.mubr.bf16.mxu0 0
        %1110 = vmatmul.mubr.bf16.gmra.mxu0 %v1013
        %v1111 = vpop.f32.mrf.mxu0
        %v1112 = vadd.f32 0.0, %v1111
        %v1113 = vpop.f32.mrf.mxu0
        %v1114 = vpop.f32.mrf.mxu0
        %v1115 = vadd.f32 0.0, %v1114
        %v1116 = vpop.f32.mrf.mxu0
        %1117 = vmatprep.mubr.bf16.mxu0 0
        %1118 = vmatmul.mubr.bf16.gmra.mxu0 %v1016
        %v1119 = vpop.f32.mrf.mxu0
        %v1120 = vadd.f32 0.0, %v1119
        %v1121 = vpop.f32.mrf.mxu0
        %v1122 = vpop.f32.mrf.mxu0
        %v1123 = vadd.f32 0.0, %v1122
        %v1124 = vpop.f32.mrf.mxu0
        %1125 = vdwg.mxu0
        %v1126 = vadd.f32 %v897, %v1056
        %v1127 = vadd.f32 %v898, %v1059
        %v1128 = vadd.f32 %v899, %v1064
        %v1129 = vadd.f32 %v900, %v1067
        %v1130 = vadd.f32 %v901, %v1072
        %v1131 = vadd.f32 %v902, %v1075
        %v1132 = vadd.f32 %v903, %v1080
        %v1133 = vadd.f32 %v904, %v1083
        %v1134 = vadd.f32 %v905, %v1088
        %v1135 = vadd.f32 %v906, %v1091
        %v1136 = vadd.f32 %v907, %v1096
        %v1137 = vadd.f32 %v908, %v1099
        %v1138 = vadd.f32 %v909, %v1104
        %v1139 = vadd.f32 %v910, %v1107
        %v1140 = vadd.f32 %v911, %v1112
        %v1141 = vadd.f32 %v912, %v1115
        %v1142 = vadd.f32 %v913, %v1120
        %v1143 = vadd.f32 %v914, %v1123
        %v1144 = vld [vmem:[%s248 + $0x10] sm:$0xf]
        %v1145 = vld [vmem:[%s248 + $0x14] sm:$0xf]
        %v1146 = vld [vmem:[%s248 + $0x18] sm:$0xf]
        %v1147 = vld [vmem:[%s248 + $0x1c] sm:$0xf]
        %v1148 = vld [vmem:[%s248 + $0x20] sm:$0xf]
        %v1149 = vld [vmem:[%s248 + $0x24] sm:$0xf]
        %v1150 = vld [vmem:[%s248 + $0x28] sm:$0xf]
        %v1151 = vld [vmem:[%s248 + $0x2c] sm:$0xf]
        %v1152 = vld [vmem:[%s248 + $0x30] sm:$0xf]
        %v1153 = vld [vmem:[%s248 + $0x34] sm:$0xf]
        %v1154 = vld [vmem:[%s248 + $0x38] sm:$0xf]
        %v1155 = vld [vmem:[%s248 + $0x3c] sm:$0xf]
        %v1156 = vld [vmem:[%s248 + $0x40] sm:$0xf]
        %v1157 = vld [vmem:[%s248 + $0x44] sm:$0xf]
        %v1158 = vld [vmem:[%s248 + $0x48] sm:$0xf]
        %v1159 = vld [vmem:[%s248 + $0x4c] sm:$0xf]
        %v1160 = vld [vmem:[%s248 + $0x50] sm:$0xf]
        %v1161 = vld [vmem:[%s248 + $0x54] sm:$0xf]
        %s1162 = scalar_lea.vmem %s2, 48
        %v1163 = vld [vmem:[%s1162] sm:$0xf]
        %v1164 = vld [vmem:[%s1162 + $0x4] sm:$0xf]
        %v1165 = vld [vmem:[%s1162 + $0x8] sm:$0x7]
        %v1184 = vunpack.c.l.b16 %v1144
        %v1185 = vunpack.c.l.b16 %v1145
        %v1186 = vunpack.c.l.b16 %v1146
        %v1187 = vunpack.c.l.b16 %v1147
        %v1188 = vunpack.c.l.b16 %v1148
        %v1189 = vunpack.c.l.b16 %v1149
        %v1190 = vunpack.c.l.b16 %v1150
        %v1191 = vunpack.c.l.b16 %v1151
        %v1192 = vunpack.c.l.b16 %v1152
        %v1193 = vunpack.c.l.b16 %v1153
        %v1194 = vunpack.c.l.b16 %v1154
        %v1195 = vunpack.c.l.b16 %v1155
        %v1196 = vunpack.c.l.b16 %v1156
        %v1197 = vunpack.c.l.b16 %v1157
        %v1198 = vunpack.c.l.b16 %v1158
        %v1199 = vunpack.c.l.b16 %v1159
        %v1200 = vunpack.c.l.b16 %v1160
        %v1201 = vunpack.c.l.b16 %v1161
        %v1202 = vpack.c.b16 %v1185, %v1184
        %v1203 = vpack.c.b16 %v1187, %v1186
        %v1204 = vpack.c.b16 %v1189, %v1188
        %v1205 = vpack.c.b16 %v1191, %v1190
        %v1206 = vpack.c.b16 %v1193, %v1192
        %v1207 = vpack.c.b16 %v1195, %v1194
        %v1208 = vpack.c.b16 %v1197, %v1196
        %v1209 = vpack.c.b16 %v1199, %v1198
        %v1210 = vpack.c.b16 %v1201, %v1200
        %v1214 = vunpack.c.l.b16 %v1163
        %v1215 = vunpack.c.l.b16 %v1164
        %v1216 = vunpack.c.l.b16 %v1165
        %v1217 = vpack.c.b16 %v1215, %v1214
        %v1218 = vpack.c.b16 %v1216, %v1216
        %v1221 = vsel %vm357, %v1202, 0
        %v1224 = vsel %vm357, %v1203, 0
        %v1227 = vsel %vm357, %v1204, 0
        %v1230 = vsel %vm357, %v1205, 0
        %v1233 = vsel %vm357, %v1206, 0
        %v1236 = vsel %vm357, %v1207, 0
        %v1239 = vsel %vm357, %v1208, 0
        %v1242 = vsel %vm357, %v1209, 0
        %v1245 = vsel %vm357, %v1210, 0
        %v1248 = vand.u32 %v1218, %v388
        %1250 = vmatprep.subr.bf16.mxu0 0
        %1251 = vmatpush1.bf16.msra.mxu0 0
        %1252 = vmatprep.subr.bf16.mxu0 0
        %1253 = vmatpush1.bf16.msra.mxu0 0
        %1254 = vmatprep.subr.bf16.mxu0 0
        %1255 = vmatpush1.bf16.msra.mxu0 0
        %1256 = vmatprep.subr.bf16.mxu0 0
        %1257 = vmatpush1.bf16.msra.mxu0 0
        %1258 = vmatprep.subr.bf16.mxu0 0
        %1259 = vmatpush1.bf16.msra.mxu0 0
        %1260 = vmatprep.subr.bf16.mxu0 0
        %1261 = vmatpush1.bf16.msra.mxu0 0
        %1262 = vmatprep.subr.bf16.mxu0 0
        %1263 = vmatpush1.bf16.msra.mxu0 %v1248
        %1264 = vmatprep.subr.bf16.mxu0 0
        %1265 = vmatpush1.bf16.msra.mxu0 %v1217
        %1266 = vmatprep.subr.bf16.mxu0 0
        %1267 = vmatpush2.bf16.msra.mxu0 0
        %1268 = vmatprep.subr.bf16.mxu0 0
        %1269 = vmatpush2.bf16.msra.mxu0 0
        %1270 = vmatprep.subr.bf16.mxu0 0
        %1271 = vmatpush2.bf16.msra.mxu0 0
        %1272 = vmatprep.subr.bf16.mxu0 0
        %1273 = vmatpush2.bf16.msra.mxu0 0
        %1274 = vmatprep.subr.bf16.mxu0 0
        %1275 = vmatpush2.bf16.msra.mxu0 0
        %1276 = vmatprep.subr.bf16.mxu0 0
        %1277 = vmatpush2.bf16.msra.mxu0 0
        %1278 = vmatprep.subr.bf16.mxu0 0
        %1279 = vmatpush2.bf16.msra.mxu0 0
        %1280 = vmatprep.subr.bf16.mxu0 0
        %1281 = vmatpush2.bf16.msra.mxu0 0
        %1282 = vmatprep.mubr.bf16.mxu0 0
        %1283 = vmatmul.mubr.bf16.gmra.mxu0 %v1221
        %v1284 = vpop.f32.mrf.mxu0
        %v1285 = vadd.f32 0.0, %v1284
        %v1286 = vpop.f32.mrf.mxu0
        %v1287 = vpop.f32.mrf.mxu0
        %v1288 = vadd.f32 0.0, %v1287
        %v1289 = vpop.f32.mrf.mxu0
        %1290 = vmatprep.mubr.bf16.mxu0 0
        %1291 = vmatmul.mubr.bf16.gmra.mxu0 %v1224
        %v1292 = vpop.f32.mrf.mxu0
        %v1293 = vadd.f32 0.0, %v1292
        %v1294 = vpop.f32.mrf.mxu0
        %v1295 = vpop.f32.mrf.mxu0
        %v1296 = vadd.f32 0.0, %v1295
        %v1297 = vpop.f32.mrf.mxu0
        %1298 = vmatprep.mubr.bf16.mxu0 0
        %1299 = vmatmul.mubr.bf16.gmra.mxu0 %v1227
        %v1300 = vpop.f32.mrf.mxu0
        %v1301 = vadd.f32 0.0, %v1300
        %v1302 = vpop.f32.mrf.mxu0
        %v1303 = vpop.f32.mrf.mxu0
        %v1304 = vadd.f32 0.0, %v1303
        %v1305 = vpop.f32.mrf.mxu0
        %1306 = vmatprep.mubr.bf16.mxu0 0
        %1307 = vmatmul.mubr.bf16.gmra.mxu0 %v1230
        %v1308 = vpop.f32.mrf.mxu0
        %v1309 = vadd.f32 0.0, %v1308
        %v1310 = vpop.f32.mrf.mxu0
        %v1311 = vpop.f32.mrf.mxu0
        %v1312 = vadd.f32 0.0, %v1311
        %v1313 = vpop.f32.mrf.mxu0
        %1314 = vmatprep.mubr.bf16.mxu0 0
        %1315 = vmatmul.mubr.bf16.gmra.mxu0 %v1233
        %v1316 = vpop.f32.mrf.mxu0
        %v1317 = vadd.f32 0.0, %v1316
        %v1318 = vpop.f32.mrf.mxu0
        %v1319 = vpop.f32.mrf.mxu0
        %v1320 = vadd.f32 0.0, %v1319
        %v1321 = vpop.f32.mrf.mxu0
        %1322 = vmatprep.mubr.bf16.mxu0 0
        %1323 = vmatmul.mubr.bf16.gmra.mxu0 %v1236
        %v1324 = vpop.f32.mrf.mxu0
        %v1325 = vadd.f32 0.0, %v1324
        %v1326 = vpop.f32.mrf.mxu0
        %v1327 = vpop.f32.mrf.mxu0
        %v1328 = vadd.f32 0.0, %v1327
        %v1329 = vpop.f32.mrf.mxu0
        %1330 = vmatprep.mubr.bf16.mxu0 0
        %1331 = vmatmul.mubr.bf16.gmra.mxu0 %v1239
        %v1332 = vpop.f32.mrf.mxu0
        %v1333 = vadd.f32 0.0, %v1332
        %v1334 = vpop.f32.mrf.mxu0
        %v1335 = vpop.f32.mrf.mxu0
        %v1336 = vadd.f32 0.0, %v1335
        %v1337 = vpop.f32.mrf.mxu0
        %1338 = vmatprep.mubr.bf16.mxu0 0
        %1339 = vmatmul.mubr.bf16.gmra.mxu0 %v1242
        %v1340 = vpop.f32.mrf.mxu0
        %v1341 = vadd.f32 0.0, %v1340
        %v1342 = vpop.f32.mrf.mxu0
        %v1343 = vpop.f32.mrf.mxu0
        %v1344 = vadd.f32 0.0, %v1343
        %v1345 = vpop.f32.mrf.mxu0
        %1346 = vmatprep.mubr.bf16.mxu0 0
        %1347 = vmatmul.mubr.bf16.gmra.mxu0 %v1245
        %v1348 = vpop.f32.mrf.mxu0
        %v1349 = vadd.f32 0.0, %v1348
        %v1350 = vpop.f32.mrf.mxu0
        %v1351 = vpop.f32.mrf.mxu0
        %v1352 = vadd.f32 0.0, %v1351
        %v1353 = vpop.f32.mrf.mxu0
        %1354 = vdwg.mxu0
        %v1355 = vadd.f32 %v1126, %v1285
        %v1356 = vadd.f32 %v1127, %v1288
        %v1357 = vadd.f32 %v1128, %v1293
        %v1358 = vadd.f32 %v1129, %v1296
        %v1359 = vadd.f32 %v1130, %v1301
        %v1360 = vadd.f32 %v1131, %v1304
        %v1361 = vadd.f32 %v1132, %v1309
        %v1362 = vadd.f32 %v1133, %v1312
        %v1363 = vadd.f32 %v1134, %v1317
        %v1364 = vadd.f32 %v1135, %v1320
        %v1365 = vadd.f32 %v1136, %v1325
        %v1366 = vadd.f32 %v1137, %v1328
        %v1367 = vadd.f32 %v1138, %v1333
        %v1368 = vadd.f32 %v1139, %v1336
        %v1369 = vadd.f32 %v1140, %v1341
        %v1370 = vadd.f32 %v1141, %v1344
        %v1371 = vadd.f32 %v1142, %v1349
        %v1372 = vadd.f32 %v1143, %v1352
        %v1373 = vld [vmem:[%s257 + $0x10] sm:$0xf]
        %v1374 = vld [vmem:[%s257 + $0x14] sm:$0xf]
        %v1375 = vld [vmem:[%s257 + $0x18] sm:$0xf]
        %v1376 = vld [vmem:[%s257 + $0x1c] sm:$0xf]
        %v1377 = vld [vmem:[%s257 + $0x20] sm:$0xf]
        %v1378 = vld [vmem:[%s257 + $0x24] sm:$0xf]
        %v1379 = vld [vmem:[%s257 + $0x28] sm:$0xf]
        %v1380 = vld [vmem:[%s257 + $0x2c] sm:$0xf]
        %v1381 = vld [vmem:[%s257 + $0x30] sm:$0xf]
        %v1382 = vld [vmem:[%s257 + $0x34] sm:$0xf]
        %v1383 = vld [vmem:[%s257 + $0x38] sm:$0xf]
        %v1384 = vld [vmem:[%s257 + $0x3c] sm:$0xf]
        %v1385 = vld [vmem:[%s257 + $0x40] sm:$0xf]
        %v1386 = vld [vmem:[%s257 + $0x44] sm:$0xf]
        %v1387 = vld [vmem:[%s257 + $0x48] sm:$0xf]
        %v1388 = vld [vmem:[%s257 + $0x4c] sm:$0xf]
        %v1389 = vld [vmem:[%s257 + $0x50] sm:$0xf]
        %v1390 = vld [vmem:[%s257 + $0x54] sm:$0xf]
        %s1391 = scalar_lea.vmem %s2, 60
        %v1392 = vld [vmem:[%s1391] sm:$0xf]
        %v1393 = vld [vmem:[%s1391 + $0x4] sm:$0xf]
        %v1394 = vld [vmem:[%s1391 + $0x8] sm:$0x7]
        %v1413 = vunpack.c.l.b16 %v1373
        %v1414 = vunpack.c.l.b16 %v1374
        %v1415 = vunpack.c.l.b16 %v1375
        %v1416 = vunpack.c.l.b16 %v1376
        %v1417 = vunpack.c.l.b16 %v1377
        %v1418 = vunpack.c.l.b16 %v1378
        %v1419 = vunpack.c.l.b16 %v1379
        %v1420 = vunpack.c.l.b16 %v1380
        %v1421 = vunpack.c.l.b16 %v1381
        %v1422 = vunpack.c.l.b16 %v1382
        %v1423 = vunpack.c.l.b16 %v1383
        %v1424 = vunpack.c.l.b16 %v1384
        %v1425 = vunpack.c.l.b16 %v1385
        %v1426 = vunpack.c.l.b16 %v1386
        %v1427 = vunpack.c.l.b16 %v1387
        %v1428 = vunpack.c.l.b16 %v1388
        %v1429 = vunpack.c.l.b16 %v1389
        %v1430 = vunpack.c.l.b16 %v1390
        %v1431 = vpack.c.b16 %v1414, %v1413
        %v1432 = vpack.c.b16 %v1416, %v1415
        %v1433 = vpack.c.b16 %v1418, %v1417
        %v1434 = vpack.c.b16 %v1420, %v1419
        %v1435 = vpack.c.b16 %v1422, %v1421
        %v1436 = vpack.c.b16 %v1424, %v1423
        %v1437 = vpack.c.b16 %v1426, %v1425
        %v1438 = vpack.c.b16 %v1428, %v1427
        %v1439 = vpack.c.b16 %v1430, %v1429
        %v1443 = vunpack.c.l.b16 %v1392
        %v1444 = vunpack.c.l.b16 %v1393
        %v1445 = vunpack.c.l.b16 %v1394
        %v1446 = vpack.c.b16 %v1444, %v1443
        %v1447 = vpack.c.b16 %v1445, %v1445
        %v1450 = vsel %vm357, %v1431, 0
        %v1453 = vsel %vm357, %v1432, 0
        %v1456 = vsel %vm357, %v1433, 0
        %v1459 = vsel %vm357, %v1434, 0
        %v1462 = vsel %vm357, %v1435, 0
        %v1465 = vsel %vm357, %v1436, 0
        %v1468 = vsel %vm357, %v1437, 0
        %v1471 = vsel %vm357, %v1438, 0
        %v1474 = vsel %vm357, %v1439, 0
        %v1477 = vand.u32 %v1447, %v388
        %1479 = vmatprep.subr.bf16.mxu0 0
        %1480 = vmatpush1.bf16.msra.mxu0 0
        %1481 = vmatprep.subr.bf16.mxu0 0
        %1482 = vmatpush1.bf16.msra.mxu0 0
        %1483 = vmatprep.subr.bf16.mxu0 0
        %1484 = vmatpush1.bf16.msra.mxu0 0
        %1485 = vmatprep.subr.bf16.mxu0 0
        %1486 = vmatpush1.bf16.msra.mxu0 0
        %1487 = vmatprep.subr.bf16.mxu0 0
        %1488 = vmatpush1.bf16.msra.mxu0 0
        %1489 = vmatprep.subr.bf16.mxu0 0
        %1490 = vmatpush1.bf16.msra.mxu0 0
        %1491 = vmatprep.subr.bf16.mxu0 0
        %1492 = vmatpush1.bf16.msra.mxu0 %v1477
        %1493 = vmatprep.subr.bf16.mxu0 0
        %1494 = vmatpush1.bf16.msra.mxu0 %v1446
        %1495 = vmatprep.subr.bf16.mxu0 0
        %1496 = vmatpush2.bf16.msra.mxu0 0
        %1497 = vmatprep.subr.bf16.mxu0 0
        %1498 = vmatpush2.bf16.msra.mxu0 0
        %1499 = vmatprep.subr.bf16.mxu0 0
        %1500 = vmatpush2.bf16.msra.mxu0 0
        %1501 = vmatprep.subr.bf16.mxu0 0
        %1502 = vmatpush2.bf16.msra.mxu0 0
        %1503 = vmatprep.subr.bf16.mxu0 0
        %1504 = vmatpush2.bf16.msra.mxu0 0
        %1505 = vmatprep.subr.bf16.mxu0 0
        %1506 = vmatpush2.bf16.msra.mxu0 0
        %1507 = vmatprep.subr.bf16.mxu0 0
        %1508 = vmatpush2.bf16.msra.mxu0 0
        %1509 = vmatprep.subr.bf16.mxu0 0
        %1510 = vmatpush2.bf16.msra.mxu0 0
        %1511 = vmatprep.mubr.bf16.mxu0 0
        %1512 = vmatmul.mubr.bf16.gmra.mxu0 %v1450
        %v1513 = vpop.f32.mrf.mxu0
        %v1514 = vadd.f32 0.0, %v1513
        %v1515 = vpop.f32.mrf.mxu0
        %v1516 = vpop.f32.mrf.mxu0
        %v1517 = vadd.f32 0.0, %v1516
        %v1518 = vpop.f32.mrf.mxu0
        %1519 = vmatprep.mubr.bf16.mxu0 0
        %1520 = vmatmul.mubr.bf16.gmra.mxu0 %v1453
        %v1521 = vpop.f32.mrf.mxu0
        %v1522 = vadd.f32 0.0, %v1521
        %v1523 = vpop.f32.mrf.mxu0
        %v1524 = vpop.f32.mrf.mxu0
        %v1525 = vadd.f32 0.0, %v1524
        %v1526 = vpop.f32.mrf.mxu0
        %1527 = vmatprep.mubr.bf16.mxu0 0
        %1528 = vmatmul.mubr.bf16.gmra.mxu0 %v1456
        %v1529 = vpop.f32.mrf.mxu0
        %v1530 = vadd.f32 0.0, %v1529
        %v1531 = vpop.f32.mrf.mxu0
        %v1532 = vpop.f32.mrf.mxu0
        %v1533 = vadd.f32 0.0, %v1532
        %v1534 = vpop.f32.mrf.mxu0
        %1535 = vmatprep.mubr.bf16.mxu0 0
        %1536 = vmatmul.mubr.bf16.gmra.mxu0 %v1459
        %v1537 = vpop.f32.mrf.mxu0
        %v1538 = vadd.f32 0.0, %v1537
        %v1539 = vpop.f32.mrf.mxu0
        %v1540 = vpop.f32.mrf.mxu0
        %v1541 = vadd.f32 0.0, %v1540
        %v1542 = vpop.f32.mrf.mxu0
        %1543 = vmatprep.mubr.bf16.mxu0 0
        %1544 = vmatmul.mubr.bf16.gmra.mxu0 %v1462
        %v1545 = vpop.f32.mrf.mxu0
        %v1546 = vadd.f32 0.0, %v1545
        %v1547 = vpop.f32.mrf.mxu0
        %v1548 = vpop.f32.mrf.mxu0
        %v1549 = vadd.f32 0.0, %v1548
        %v1550 = vpop.f32.mrf.mxu0
        %1551 = vmatprep.mubr.bf16.mxu0 0
        %1552 = vmatmul.mubr.bf16.gmra.mxu0 %v1465
        %v1553 = vpop.f32.mrf.mxu0
        %v1554 = vadd.f32 0.0, %v1553
        %v1555 = vpop.f32.mrf.mxu0
        %v1556 = vpop.f32.mrf.mxu0
        %v1557 = vadd.f32 0.0, %v1556
        %v1558 = vpop.f32.mrf.mxu0
        %1559 = vmatprep.mubr.bf16.mxu0 0
        %1560 = vmatmul.mubr.bf16.gmra.mxu0 %v1468
        %v1561 = vpop.f32.mrf.mxu0
        %v1562 = vadd.f32 0.0, %v1561
        %v1563 = vpop.f32.mrf.mxu0
        %v1564 = vpop.f32.mrf.mxu0
        %v1565 = vadd.f32 0.0, %v1564
        %v1566 = vpop.f32.mrf.mxu0
        %1567 = vmatprep.mubr.bf16.mxu0 0
        %1568 = vmatmul.mubr.bf16.gmra.mxu0 %v1471
        %v1569 = vpop.f32.mrf.mxu0
        %v1570 = vadd.f32 0.0, %v1569
        %v1571 = vpop.f32.mrf.mxu0
        %v1572 = vpop.f32.mrf.mxu0
        %v1573 = vadd.f32 0.0, %v1572
        %v1574 = vpop.f32.mrf.mxu0
        %1575 = vmatprep.mubr.bf16.mxu0 0
        %1576 = vmatmul.mubr.bf16.gmra.mxu0 %v1474
        %v1577 = vpop.f32.mrf.mxu0
        %v1578 = vadd.f32 0.0, %v1577
        %v1579 = vpop.f32.mrf.mxu0
        %v1580 = vpop.f32.mrf.mxu0
        %v1581 = vadd.f32 0.0, %v1580
        %v1582 = vpop.f32.mrf.mxu0
        %1583 = vdwg.mxu0
        %v1584 = vadd.f32 %v1355, %v1514
        %v1585 = vadd.f32 %v1356, %v1517
        %v1586 = vadd.f32 %v1357, %v1522
        %v1587 = vadd.f32 %v1358, %v1525
        %v1588 = vadd.f32 %v1359, %v1530
        %v1589 = vadd.f32 %v1360, %v1533
        %v1590 = vadd.f32 %v1361, %v1538
        %v1591 = vadd.f32 %v1362, %v1541
        %v1592 = vadd.f32 %v1363, %v1546
        %v1593 = vadd.f32 %v1364, %v1549
        %v1594 = vadd.f32 %v1365, %v1554
        %v1595 = vadd.f32 %v1366, %v1557
        %v1596 = vadd.f32 %v1367, %v1562
        %v1597 = vadd.f32 %v1368, %v1565
        %v1598 = vadd.f32 %v1369, %v1570
        %v1599 = vadd.f32 %v1370, %v1573
        %v1600 = vadd.f32 %v1371, %v1578
        %v1601 = vadd.f32 %v1372, %v1581
        %v1602 = vld [vmem:[%s248 + $0x18] sm:$0xf]
        %v1603 = vld [vmem:[%s248 + $0x1c] sm:$0xf]
        %v1604 = vld [vmem:[%s248 + $0x20] sm:$0xf]
        %v1605 = vld [vmem:[%s248 + $0x24] sm:$0xf]
        %v1606 = vld [vmem:[%s248 + $0x28] sm:$0xf]
        %v1607 = vld [vmem:[%s248 + $0x2c] sm:$0xf]
        %v1608 = vld [vmem:[%s248 + $0x30] sm:$0xf]
        %v1609 = vld [vmem:[%s248 + $0x34] sm:$0xf]
        %v1610 = vld [vmem:[%s248 + $0x38] sm:$0xf]
        %v1611 = vld [vmem:[%s248 + $0x3c] sm:$0xf]
        %v1612 = vld [vmem:[%s248 + $0x40] sm:$0xf]
        %v1613 = vld [vmem:[%s248 + $0x44] sm:$0xf]
        %v1614 = vld [vmem:[%s248 + $0x48] sm:$0xf]
        %v1615 = vld [vmem:[%s248 + $0x4c] sm:$0xf]
        %v1616 = vld [vmem:[%s248 + $0x50] sm:$0xf]
        %v1617 = vld [vmem:[%s248 + $0x54] sm:$0xf]
        %v1618 = vld [vmem:[%s248 + $0x58] sm:$0xf]
        %v1619 = vld [vmem:[%s248 + $0x5c] sm:$0xf]
        %s1620 = scalar_lea.vmem %s2, 72
        %v1621 = vld [vmem:[%s1620] sm:$0xf]
        %v1622 = vld [vmem:[%s1620 + $0x4] sm:$0xf]
        %v1623 = vld [vmem:[%s1620 + $0x8] sm:$0x7]
        %v1642 = vunpack.c.l.b16 %v1602
        %v1643 = vunpack.c.l.b16 %v1603
        %v1644 = vunpack.c.l.b16 %v1604
        %v1645 = vunpack.c.l.b16 %v1605
        %v1646 = vunpack.c.l.b16 %v1606
        %v1647 = vunpack.c.l.b16 %v1607
        %v1648 = vunpack.c.l.b16 %v1608
        %v1649 = vunpack.c.l.b16 %v1609
        %v1650 = vunpack.c.l.b16 %v1610
        %v1651 = vunpack.c.l.b16 %v1611
        %v1652 = vunpack.c.l.b16 %v1612
        %v1653 = vunpack.c.l.b16 %v1613
        %v1654 = vunpack.c.l.b16 %v1614
        %v1655 = vunpack.c.l.b16 %v1615
        %v1656 = vunpack.c.l.b16 %v1616
        %v1657 = vunpack.c.l.b16 %v1617
        %v1658 = vunpack.c.l.b16 %v1618
        %v1659 = vunpack.c.l.b16 %v1619
        %v1660 = vpack.c.b16 %v1643, %v1642
        %v1661 = vpack.c.b16 %v1645, %v1644
        %v1662 = vpack.c.b16 %v1647, %v1646
        %v1663 = vpack.c.b16 %v1649, %v1648
        %v1664 = vpack.c.b16 %v1651, %v1650
        %v1665 = vpack.c.b16 %v1653, %v1652
        %v1666 = vpack.c.b16 %v1655, %v1654
        %v1667 = vpack.c.b16 %v1657, %v1656
        %v1668 = vpack.c.b16 %v1659, %v1658
        %v1672 = vunpack.c.l.b16 %v1621
        %v1673 = vunpack.c.l.b16 %v1622
        %v1674 = vunpack.c.l.b16 %v1623
        %v1675 = vpack.c.b16 %v1673, %v1672
        %v1676 = vpack.c.b16 %v1674, %v1674
        %v1679 = vsel %vm357, %v1660, 0
        %v1682 = vsel %vm357, %v1661, 0
        %v1685 = vsel %vm357, %v1662, 0
        %v1688 = vsel %vm357, %v1663, 0
        %v1691 = vsel %vm357, %v1664, 0
        %v1694 = vsel %vm357, %v1665, 0
        %v1697 = vsel %vm357, %v1666, 0
        %v1700 = vsel %vm357, %v1667, 0
        %v1703 = vsel %vm357, %v1668, 0
        %v1706 = vand.u32 %v1676, %v388
        %1708 = vmatprep.subr.bf16.mxu0 0
        %1709 = vmatpush1.bf16.msra.mxu0 0
        %1710 = vmatprep.subr.bf16.mxu0 0
        %1711 = vmatpush1.bf16.msra.mxu0 0
        %1712 = vmatprep.subr.bf16.mxu0 0
        %1713 = vmatpush1.bf16.msra.mxu0 0
        %1714 = vmatprep.subr.bf16.mxu0 0
        %1715 = vmatpush1.bf16.msra.mxu0 0
        %1716 = vmatprep.subr.bf16.mxu0 0
        %1717 = vmatpush1.bf16.msra.mxu0 0
        %1718 = vmatprep.subr.bf16.mxu0 0
        %1719 = vmatpush1.bf16.msra.mxu0 0
        %1720 = vmatprep.subr.bf16.mxu0 0
        %1721 = vmatpush1.bf16.msra.mxu0 %v1706
        %1722 = vmatprep.subr.bf16.mxu0 0
        %1723 = vmatpush1.bf16.msra.mxu0 %v1675
        %1724 = vmatprep.subr.bf16.mxu0 0
        %1725 = vmatpush2.bf16.msra.mxu0 0
        %1726 = vmatprep.subr.bf16.mxu0 0
        %1727 = vmatpush2.bf16.msra.mxu0 0
        %1728 = vmatprep.subr.bf16.mxu0 0
        %1729 = vmatpush2.bf16.msra.mxu0 0
        %1730 = vmatprep.subr.bf16.mxu0 0
        %1731 = vmatpush2.bf16.msra.mxu0 0
        %1732 = vmatprep.subr.bf16.mxu0 0
        %1733 = vmatpush2.bf16.msra.mxu0 0
        %1734 = vmatprep.subr.bf16.mxu0 0
        %1735 = vmatpush2.bf16.msra.mxu0 0
        %1736 = vmatprep.subr.bf16.mxu0 0
        %1737 = vmatpush2.bf16.msra.mxu0 0
        %1738 = vmatprep.subr.bf16.mxu0 0
        %1739 = vmatpush2.bf16.msra.mxu0 0
        %1740 = vmatprep.mubr.bf16.mxu0 0
        %1741 = vmatmul.mubr.bf16.gmra.mxu0 %v1679
        %v1742 = vpop.f32.mrf.mxu0
        %v1743 = vadd.f32 0.0, %v1742
        %v1744 = vpop.f32.mrf.mxu0
        %v1745 = vpop.f32.mrf.mxu0
        %v1746 = vadd.f32 0.0, %v1745
        %v1747 = vpop.f32.mrf.mxu0
        %1748 = vmatprep.mubr.bf16.mxu0 0
        %1749 = vmatmul.mubr.bf16.gmra.mxu0 %v1682
        %v1750 = vpop.f32.mrf.mxu0
        %v1751 = vadd.f32 0.0, %v1750
        %v1752 = vpop.f32.mrf.mxu0
        %v1753 = vpop.f32.mrf.mxu0
        %v1754 = vadd.f32 0.0, %v1753
        %v1755 = vpop.f32.mrf.mxu0
        %1756 = vmatprep.mubr.bf16.mxu0 0
        %1757 = vmatmul.mubr.bf16.gmra.mxu0 %v1685
        %v1758 = vpop.f32.mrf.mxu0
        %v1759 = vadd.f32 0.0, %v1758
        %v1760 = vpop.f32.mrf.mxu0
        %v1761 = vpop.f32.mrf.mxu0
        %v1762 = vadd.f32 0.0, %v1761
        %v1763 = vpop.f32.mrf.mxu0
        %1764 = vmatprep.mubr.bf16.mxu0 0
        %1765 = vmatmul.mubr.bf16.gmra.mxu0 %v1688
        %v1766 = vpop.f32.mrf.mxu0
        %v1767 = vadd.f32 0.0, %v1766
        %v1768 = vpop.f32.mrf.mxu0
        %v1769 = vpop.f32.mrf.mxu0
        %v1770 = vadd.f32 0.0, %v1769
        %v1771 = vpop.f32.mrf.mxu0
        %1772 = vmatprep.mubr.bf16.mxu0 0
        %1773 = vmatmul.mubr.bf16.gmra.mxu0 %v1691
        %v1774 = vpop.f32.mrf.mxu0
        %v1775 = vadd.f32 0.0, %v1774
        %v1776 = vpop.f32.mrf.mxu0
        %v1777 = vpop.f32.mrf.mxu0
        %v1778 = vadd.f32 0.0, %v1777
        %v1779 = vpop.f32.mrf.mxu0
        %1780 = vmatprep.mubr.bf16.mxu0 0
        %1781 = vmatmul.mubr.bf16.gmra.mxu0 %v1694
        %v1782 = vpop.f32.mrf.mxu0
        %v1783 = vadd.f32 0.0, %v1782
        %v1784 = vpop.f32.mrf.mxu0
        %v1785 = vpop.f32.mrf.mxu0
        %v1786 = vadd.f32 0.0, %v1785
        %v1787 = vpop.f32.mrf.mxu0
        %1788 = vmatprep.mubr.bf16.mxu0 0
        %1789 = vmatmul.mubr.bf16.gmra.mxu0 %v1697
        %v1790 = vpop.f32.mrf.mxu0
        %v1791 = vadd.f32 0.0, %v1790
        %v1792 = vpop.f32.mrf.mxu0
        %v1793 = vpop.f32.mrf.mxu0
        %v1794 = vadd.f32 0.0, %v1793
        %v1795 = vpop.f32.mrf.mxu0
        %1796 = vmatprep.mubr.bf16.mxu0 0
        %1797 = vmatmul.mubr.bf16.gmra.mxu0 %v1700
        %v1798 = vpop.f32.mrf.mxu0
        %v1799 = vadd.f32 0.0, %v1798
        %v1800 = vpop.f32.mrf.mxu0
        %v1801 = vpop.f32.mrf.mxu0
        %v1802 = vadd.f32 0.0, %v1801
        %v1803 = vpop.f32.mrf.mxu0
        %1804 = vmatprep.mubr.bf16.mxu0 0
        %1805 = vmatmul.mubr.bf16.gmra.mxu0 %v1703
        %v1806 = vpop.f32.mrf.mxu0
        %v1807 = vadd.f32 0.0, %v1806
        %v1808 = vpop.f32.mrf.mxu0
        %v1809 = vpop.f32.mrf.mxu0
        %v1810 = vadd.f32 0.0, %v1809
        %v1811 = vpop.f32.mrf.mxu0
        %1812 = vdwg.mxu0
        %v1813 = vadd.f32 %v1584, %v1743
        %v1814 = vadd.f32 %v1585, %v1746
        %v1815 = vadd.f32 %v1586, %v1751
        %v1816 = vadd.f32 %v1587, %v1754
        %v1817 = vadd.f32 %v1588, %v1759
        %v1818 = vadd.f32 %v1589, %v1762
        %v1819 = vadd.f32 %v1590, %v1767
        %v1820 = vadd.f32 %v1591, %v1770
        %v1821 = vadd.f32 %v1592, %v1775
        %v1822 = vadd.f32 %v1593, %v1778
        %v1823 = vadd.f32 %v1594, %v1783
        %v1824 = vadd.f32 %v1595, %v1786
        %v1825 = vadd.f32 %v1596, %v1791
        %v1826 = vadd.f32 %v1597, %v1794
        %v1827 = vadd.f32 %v1598, %v1799
        %v1828 = vadd.f32 %v1599, %v1802
        %v1829 = vadd.f32 %v1600, %v1807
        %v1830 = vadd.f32 %v1601, %v1810
        %v1831 = vld [vmem:[%s3] sm:$0x1]
        %v1833 = vlaneseq
        %v1834 = vshrl.u32 %v1833, 7
        %v1835 = vsub.s32 0, %v1834
        %v1836 = vrot.slane %v1831, %v1835
        %v1838 = vadd.f32 %v1813, %v1836
        %v1839 = vadd.f32 %v1814, %v1836
        %v1840 = vadd.f32 %v1815, %v1836
        %v1841 = vadd.f32 %v1816, %v1836
        %v1842 = vadd.f32 %v1817, %v1836
        %v1843 = vadd.f32 %v1818, %v1836
        %v1844 = vadd.f32 %v1819, %v1836
        %v1845 = vadd.f32 %v1820, %v1836
        %v1846 = vadd.f32 %v1821, %v1836
        %v1847 = vadd.f32 %v1822, %v1836
        %v1848 = vadd.f32 %v1823, %v1836
        %v1849 = vadd.f32 %v1824, %v1836
        %v1850 = vadd.f32 %v1825, %v1836
        %v1851 = vadd.f32 %v1826, %v1836
        %v1852 = vadd.f32 %v1827, %v1836
        %v1853 = vadd.f32 %v1828, %v1836
        %v1854 = vadd.f32 %v1829, %v1836
        %v1855 = vadd.f32 %v1830, %v1836
        %v1856 = vmax.f32 %v1838, 0.0
        %v1857 = vmax.f32 %v1839, 0.0
        %v1858 = vmax.f32 %v1840, 0.0
        %v1859 = vmax.f32 %v1841, 0.0
        %v1860 = vmax.f32 %v1842, 0.0
        %v1861 = vmax.f32 %v1843, 0.0
        %v1862 = vmax.f32 %v1844, 0.0
        %v1863 = vmax.f32 %v1845, 0.0
        %v1864 = vmax.f32 %v1846, 0.0
        %v1865 = vmax.f32 %v1847, 0.0
        %v1866 = vmax.f32 %v1848, 0.0
        %v1867 = vmax.f32 %v1849, 0.0
        %v1868 = vmax.f32 %v1850, 0.0
        %v1869 = vmax.f32 %v1851, 0.0
        %v1870 = vmax.f32 %v1852, 0.0
        %v1871 = vmax.f32 %v1853, 0.0
        %v1872 = vmax.f32 %v1854, 0.0
        %v1873 = vmax.f32 %v1855, 0.0
        %s1874 = smul.u32 %s23, 8
        %s1875 = ssub.s32 %s1874, 1
        %v1876 = vstv %s1875
        %v1877 = vadd.s32 %v1876, 1
        %v1878 = vadd.s32 %v1876, 2
        %v1879 = vadd.s32 %v1876, 3
        %v1880 = vadd.s32 %v1876, 4
        %v1881 = vadd.s32 %v1876, 5
        %v1882 = vadd.s32 %v1876, 6
        %v1883 = vadd.s32 %v1876, 7
        %v1884 = vadd.s32 %v1876, 8
        %vm1885 = vcmp.ge.s32.totalorder %v1876, 0
        %vm1886 = vcmp.ge.s32.totalorder %v1877, 0
        %vm1887 = vcmp.ge.s32.totalorder %v1878, 0
        %vm1888 = vcmp.ge.s32.totalorder %v1879, 0
        %vm1889 = vcmp.ge.s32.totalorder %v1880, 0
        %vm1890 = vcmp.ge.s32.totalorder %v1881, 0
        %vm1891 = vcmp.ge.s32.totalorder %v1882, 0
        %vm1892 = vcmp.ge.s32.totalorder %v1883, 0
        %vm1893 = vcmp.ge.s32.totalorder %v1884, 0
        %vm1894 = vcmp.lt.s32.totalorder %v1876, 16
        %vm1895 = vcmp.lt.s32.totalorder %v1877, 16
        %vm1896 = vcmp.lt.s32.totalorder %v1878, 16
        %vm1897 = vcmp.lt.s32.totalorder %v1879, 16
        %vm1898 = vcmp.lt.s32.totalorder %v1880, 16
        %vm1899 = vcmp.lt.s32.totalorder %v1881, 16
        %vm1900 = vcmp.lt.s32.totalorder %v1882, 16
        %vm1901 = vcmp.lt.s32.totalorder %v1883, 16
        %vm1902 = vcmp.lt.s32.totalorder %v1884, 16
        %vm1903 = vmand %vm1885, %vm1894
        %vm1904 = vmand %vm1886, %vm1895
        %vm1905 = vmand %vm1887, %vm1896
        %vm1906 = vmand %vm1888, %vm1897
        %vm1907 = vmand %vm1889, %vm1898
        %vm1908 = vmand %vm1890, %vm1899
        %vm1909 = vmand %vm1891, %vm1900
        %vm1910 = vmand %vm1892, %vm1901
        %vm1911 = vmand %vm1893, %vm1902
        %v1912 = vsel %vm1903, 1, 0
        %v1913 = vsel %vm1904, 1, 0
        %v1914 = vsel %vm1905, 1, 0
        %v1915 = vsel %vm1906, 1, 0
        %v1916 = vsel %vm1907, 1, 0
        %v1917 = vsel %vm1908, 1, 0
        %v1918 = vsel %vm1909, 1, 0
        %v1919 = vsel %vm1910, 1, 0
        %v1920 = vsel %vm1911, 1, 0
        %vm1921 = vcmp.eq.s32.totalorder %v1912, 1
        %vm1922 = vcmp.eq.s32.totalorder %v1913, 1
        %vm1923 = vcmp.eq.s32.totalorder %v1914, 1
        %vm1924 = vcmp.eq.s32.totalorder %v1915, 1
        %vm1925 = vcmp.eq.s32.totalorder %v1916, 1
        %vm1926 = vcmp.eq.s32.totalorder %v1917, 1
        %vm1927 = vcmp.eq.s32.totalorder %v1918, 1
        %vm1928 = vcmp.eq.s32.totalorder %v1919, 1
        %vm1929 = vcmp.eq.s32.totalorder %v1920, 1
        %v1930 = vsel %vm1921, %v1856, 0.0
        %v1931 = vsel %vm1921, %v1857, 0.0
        %v1932 = vsel %vm1922, %v1858, 0.0
        %v1933 = vsel %vm1922, %v1859, 0.0
        %v1934 = vsel %vm1923, %v1860, 0.0
        %v1935 = vsel %vm1923, %v1861, 0.0
        %v1936 = vsel %vm1924, %v1862, 0.0
        %v1937 = vsel %vm1924, %v1863, 0.0
        %v1938 = vsel %vm1925, %v1864, 0.0
        %v1939 = vsel %vm1925, %v1865, 0.0
        %v1940 = vsel %vm1926, %v1866, 0.0
        %v1941 = vsel %vm1926, %v1867, 0.0
        %v1942 = vsel %vm1927, %v1868, 0.0
        %v1943 = vsel %vm1927, %v1869, 0.0
        %v1944 = vsel %vm1928, %v1870, 0.0
        %v1945 = vsel %vm1928, %v1871, 0.0
        %v1946 = vsel %vm1929, %v1872, 0.0
        %v1947 = vsel %vm1929, %v1873, 0.0
        %v1948 = vmax.f32 %v1930, %v1932
        %v1949 = vmax.f32 %v1931, %v1933
        %v1950 = vmax.f32 %v1932, %v1934
        %v1951 = vmax.f32 %v1933, %v1935
        %v1952 = vmax.f32 %v1934, %v1936
        %v1953 = vmax.f32 %v1935, %v1937
        %v1954 = vmax.f32 %v1936, %v1938
        %v1955 = vmax.f32 %v1937, %v1939
        %v1956 = vmax.f32 %v1938, %v1940
        %v1957 = vmax.f32 %v1939, %v1941
        %v1958 = vmax.f32 %v1940, %v1942
        %v1959 = vmax.f32 %v1941, %v1943
        %v1960 = vmax.f32 %v1942, %v1944
        %v1961 = vmax.f32 %v1943, %v1945
        %v1962 = vmax.f32 %v1944, %v1946
        %v1963 = vmax.f32 %v1945, %v1947
        %v1964 = vmax.f32 %v1948, %v1950
        %v1965 = vmax.f32 %v1949, %v1951
        %v1966 = vmax.f32 %v1952, %v1954
        %v1967 = vmax.f32 %v1953, %v1955
        %v1968 = vmax.f32 %v1956, %v1958
        %v1969 = vmax.f32 %v1957, %v1959
        %v1970 = vmax.f32 %v1960, %v1962
        %v1971 = vmax.f32 %v1961, %v1963
        %vm1980 = vcmask 1040384
        %v1981 = vrot.slane %v1964, 7
        %v1982 = vrot.slane %v1965, 7
        %v1983 = vsel %vm1980, %v1981, %v1982
        %v1984 = vrot.slane %v1966, 7
        %v1985 = vrot.slane %v1967, 7
        %v1986 = vsel %vm1980, %v1984, %v1985
        %v1987 = vrot.slane %v1968, 7
        %v1988 = vrot.slane %v1969, 7
        %v1989 = vsel %vm1980, %v1987, %v1988
        %v1990 = vrot.slane %v1970, 7
        %v1991 = vrot.slane %v1971, 7
        %v1992 = vsel %vm1980, %v1990, %v1991
        %v2005 = vsel %vm1980, 0.0, %v1981
        %v2006 = vsel %vm1980, 0.0, %v1984
        %v2007 = vsel %vm1980, 0.0, %v1987
        %v2008 = vsel %vm1980, 0.0, %v1990
        %v2009 = vsel %vm1980, %v1982, 0.0
        %v2010 = vsel %vm1980, %v1985, 0.0
        %v2011 = vsel %vm1980, %v1988, 0.0
        %v2012 = vsel %vm1980, %v1991, 0.0
        %vm2021 = vcmask 1046528
        %v2022 = vrot.slane %v2005, 1
        %v2023 = vrot.slane %v1983, 1
        %v2024 = vsel %vm2021, %v2022, %v2023
        %v2025 = vrot.slane %v2009, 1
        %v2026 = vsel %vm2021, %v2023, %v2025
        %v2027 = vrot.slane %v2006, 1
        %v2028 = vrot.slane %v1986, 1
        %v2029 = vsel %vm2021, %v2027, %v2028
        %v2030 = vrot.slane %v2010, 1
        %v2031 = vsel %vm2021, %v2028, %v2030
        %v2032 = vrot.slane %v2007, 1
        %v2033 = vrot.slane %v1989, 1
        %v2034 = vsel %vm2021, %v2032, %v2033
        %v2035 = vrot.slane %v2011, 1
        %v2036 = vsel %vm2021, %v2033, %v2035
        %v2037 = vrot.slane %v2008, 1
        %v2038 = vrot.slane %v1992, 1
        %v2039 = vsel %vm2021, %v2037, %v2038
        %v2040 = vrot.slane %v2012, 1
        %v2041 = vsel %vm2021, %v2038, %v2040
        %v2050 = vmax.f32 %v2005, %v2024
        %v2051 = vmax.f32 %v1983, %v2026
        %v2052 = vmax.f32 %v2006, %v2029
        %v2053 = vmax.f32 %v1986, %v2031
        %v2054 = vmax.f32 %v2007, %v2034
        %v2055 = vmax.f32 %v1989, %v2036
        %v2056 = vmax.f32 %v2008, %v2039
        %v2057 = vmax.f32 %v1992, %v2041
        %v2066 = vcombine.high %v2050, %v2050
        %v2068 = vunpack.c.l.s4 1983009808
        %v2069 = vunpack.c.0.s8 %v2068
        %v2070 = vlaneseq
        %v2071 = vshrl.u32 %v2070, 7
        %v2072 = vsub.s32 %v2069, %v2071
        %v2073 = vrot.slane %v2050, %v2072
        %v2075 = vunpack.c.l.s4 1983009808
        %v2076 = vunpack.c.0.s8 %v2075
        %v2077 = vlaneseq
        %v2078 = vshrl.u32 %v2077, 7
        %v2079 = vsub.s32 %v2076, %v2078
        %v2080 = vrot.slane %v2066, %v2079
        %v2081 = vcombine.high %v2073, %v2073
        %v2082 = vcombine.high %v2080, %v2080
        %v2083 = vcombine.high %v2051, %v2051
        %v2085 = vunpack.c.l.s4 1983009808
        %v2086 = vunpack.c.0.s8 %v2085
        %v2087 = vlaneseq
        %v2088 = vshrl.u32 %v2087, 7
        %v2089 = vsub.s32 %v2086, %v2088
        %v2090 = vrot.slane %v2051, %v2089
        %v2092 = vunpack.c.l.s4 1983009808
        %v2093 = vunpack.c.0.s8 %v2092
        %v2094 = vlaneseq
        %v2095 = vshrl.u32 %v2094, 7
        %v2096 = vsub.s32 %v2093, %v2095
        %v2097 = vrot.slane %v2083, %v2096
        %v2098 = vcombine.high %v2090, %v2090
        %v2099 = vcombine.high %v2097, %v2097
        %v2100 = vcombine.high %v2052, %v2052
        %v2102 = vunpack.c.l.s4 1983009808
        %v2103 = vunpack.c.0.s8 %v2102
        %v2104 = vlaneseq
        %v2105 = vshrl.u32 %v2104, 7
        %v2106 = vsub.s32 %v2103, %v2105
        %v2107 = vrot.slane %v2052, %v2106
        %v2109 = vunpack.c.l.s4 1983009808
        %v2110 = vunpack.c.0.s8 %v2109
        %v2111 = vlaneseq
        %v2112 = vshrl.u32 %v2111, 7
        %v2113 = vsub.s32 %v2110, %v2112
        %v2114 = vrot.slane %v2100, %v2113
        %v2115 = vcombine.high %v2107, %v2107
        %v2116 = vcombine.high %v2114, %v2114
        %v2117 = vcombine.high %v2053, %v2053
        %v2119 = vunpack.c.l.s4 1983009808
        %v2120 = vunpack.c.0.s8 %v2119
        %v2121 = vlaneseq
        %v2122 = vshrl.u32 %v2121, 7
        %v2123 = vsub.s32 %v2120, %v2122
        %v2124 = vrot.slane %v2053, %v2123
        %v2126 = vunpack.c.l.s4 1983009808
        %v2127 = vunpack.c.0.s8 %v2126
        %v2128 = vlaneseq
        %v2129 = vshrl.u32 %v2128, 7
        %v2130 = vsub.s32 %v2127, %v2129
        %v2131 = vrot.slane %v2117, %v2130
        %v2132 = vcombine.high %v2124, %v2124
        %v2133 = vcombine.high %v2131, %v2131
        %v2134 = vcombine.high %v2054, %v2054
        %v2136 = vunpack.c.l.s4 1983009808
        %v2137 = vunpack.c.0.s8 %v2136
        %v2138 = vlaneseq
        %v2139 = vshrl.u32 %v2138, 7
        %v2140 = vsub.s32 %v2137, %v2139
        %v2141 = vrot.slane %v2054, %v2140
        %v2143 = vunpack.c.l.s4 1983009808
        %v2144 = vunpack.c.0.s8 %v2143
        %v2145 = vlaneseq
        %v2146 = vshrl.u32 %v2145, 7
        %v2147 = vsub.s32 %v2144, %v2146
        %v2148 = vrot.slane %v2134, %v2147
        %v2149 = vcombine.high %v2141, %v2141
        %v2150 = vcombine.high %v2148, %v2148
        %v2151 = vcombine.high %v2055, %v2055
        %v2153 = vunpack.c.l.s4 1983009808
        %v2154 = vunpack.c.0.s8 %v2153
        %v2155 = vlaneseq
        %v2156 = vshrl.u32 %v2155, 7
        %v2157 = vsub.s32 %v2154, %v2156
        %v2158 = vrot.slane %v2055, %v2157
        %v2160 = vunpack.c.l.s4 1983009808
        %v2161 = vunpack.c.0.s8 %v2160
        %v2162 = vlaneseq
        %v2163 = vshrl.u32 %v2162, 7
        %v2164 = vsub.s32 %v2161, %v2163
        %v2165 = vrot.slane %v2151, %v2164
        %v2166 = vcombine.high %v2158, %v2158
        %v2167 = vcombine.high %v2165, %v2165
        %v2168 = vcombine.high %v2056, %v2056
        %v2170 = vunpack.c.l.s4 1983009808
        %v2171 = vunpack.c.0.s8 %v2170
        %v2172 = vlaneseq
        %v2173 = vshrl.u32 %v2172, 7
        %v2174 = vsub.s32 %v2171, %v2173
        %v2175 = vrot.slane %v2056, %v2174
        %v2177 = vunpack.c.l.s4 1983009808
        %v2178 = vunpack.c.0.s8 %v2177
        %v2179 = vlaneseq
        %v2180 = vshrl.u32 %v2179, 7
        %v2181 = vsub.s32 %v2178, %v2180
        %v2182 = vrot.slane %v2168, %v2181
        %v2183 = vcombine.high %v2175, %v2175
        %v2184 = vcombine.high %v2182, %v2182
        %v2185 = vcombine.high %v2057, %v2057
        %v2187 = vunpack.c.l.s4 1983009808
        %v2188 = vunpack.c.0.s8 %v2187
        %v2189 = vlaneseq
        %v2190 = vshrl.u32 %v2189, 7
        %v2191 = vsub.s32 %v2188, %v2190
        %v2192 = vrot.slane %v2057, %v2191
        %v2194 = vunpack.c.l.s4 1983009808
        %v2195 = vunpack.c.0.s8 %v2194
        %v2196 = vlaneseq
        %v2197 = vshrl.u32 %v2196, 7
        %v2198 = vsub.s32 %v2195, %v2197
        %v2199 = vrot.slane %v2185, %v2198
        %v2200 = vcombine.high %v2192, %v2192
        %v2201 = vcombine.high %v2199, %v2199
        %v2234 = vrot.slane %v2073, 7
        %v2235 = vrot.slane %v2234, 2
        %v2236 = vrot.slane %v2081, 7
        %v2237 = vrot.slane %v2236, 2
        %v2238 = vrot.slane %v2080, 7
        %v2239 = vrot.slane %v2238, 2
        %v2240 = vrot.slane %v2082, 7
        %v2241 = vrot.slane %v2240, 2
        %v2242 = vrot.slane %v2090, 7
        %v2243 = vrot.slane %v2242, 2
        %v2244 = vrot.slane %v2098, 7
        %v2245 = vrot.slane %v2244, 2
        %v2246 = vrot.slane %v2097, 7
        %v2247 = vrot.slane %v2246, 2
        %v2248 = vrot.slane %v2099, 7
        %v2249 = vrot.slane %v2248, 2
        %v2250 = vrot.slane %v2107, 7
        %v2251 = vrot.slane %v2250, 2
        %v2252 = vrot.slane %v2115, 7
        %v2253 = vrot.slane %v2252, 2
        %v2254 = vrot.slane %v2114, 7
        %v2255 = vrot.slane %v2254, 2
        %v2256 = vrot.slane %v2116, 7
        %v2257 = vrot.slane %v2256, 2
        %v2258 = vrot.slane %v2124, 7
        %v2259 = vrot.slane %v2258, 2
        %v2260 = vrot.slane %v2132, 7
        %v2261 = vrot.slane %v2260, 2
        %v2262 = vrot.slane %v2131, 7
        %v2263 = vrot.slane %v2262, 2
        %v2264 = vrot.slane %v2133, 7
        %v2265 = vrot.slane %v2264, 2
        %v2266 = vrot.slane %v2141, 7
        %v2267 = vrot.slane %v2266, 2
        %v2268 = vrot.slane %v2149, 7
        %v2269 = vrot.slane %v2268, 2
        %v2270 = vrot.slane %v2148, 7
        %v2271 = vrot.slane %v2270, 2
        %v2272 = vrot.slane %v2150, 7
        %v2273 = vrot.slane %v2272, 2
        %v2274 = vrot.slane %v2158, 7
        %v2275 = vrot.slane %v2274, 2
        %v2276 = vrot.slane %v2166, 7
        %v2277 = vrot.slane %v2276, 2
        %v2278 = vrot.slane %v2165, 7
        %v2279 = vrot.slane %v2278, 2
        %v2280 = vrot.slane %v2167, 7
        %v2281 = vrot.slane %v2280, 2
        %v2282 = vrot.slane %v2175, 7
        %v2283 = vrot.slane %v2282, 2
        %v2284 = vrot.slane %v2183, 7
        %v2285 = vrot.slane %v2284, 2
        %v2286 = vrot.slane %v2182, 7
        %v2287 = vrot.slane %v2286, 2
        %v2288 = vrot.slane %v2184, 7
        %v2289 = vrot.slane %v2288, 2
        %v2290 = vrot.slane %v2192, 7
        %v2291 = vrot.slane %v2290, 2
        %v2292 = vrot.slane %v2200, 7
        %v2293 = vrot.slane %v2292, 2
        %v2294 = vrot.slane %v2199, 7
        %v2295 = vrot.slane %v2294, 2
        %v2296 = vrot.slane %v2201, 7
        %v2297 = vrot.slane %v2296, 2
        %v2330 = vmax.f32 %v2073, %v2235
        %v2331 = vmax.f32 %v2081, %v2237
        %v2332 = vmax.f32 %v2080, %v2239
        %v2333 = vmax.f32 %v2082, %v2241
        %v2334 = vmax.f32 %v2090, %v2243
        %v2335 = vmax.f32 %v2098, %v2245
        %v2336 = vmax.f32 %v2097, %v2247
        %v2337 = vmax.f32 %v2099, %v2249
        %v2338 = vmax.f32 %v2107, %v2251
        %v2339 = vmax.f32 %v2115, %v2253
        %v2340 = vmax.f32 %v2114, %v2255
        %v2341 = vmax.f32 %v2116, %v2257
        %v2342 = vmax.f32 %v2124, %v2259
        %v2343 = vmax.f32 %v2132, %v2261
        %v2344 = vmax.f32 %v2131, %v2263
        %v2345 = vmax.f32 %v2133, %v2265
        %v2346 = vmax.f32 %v2141, %v2267
        %v2347 = vmax.f32 %v2149, %v2269
        %v2348 = vmax.f32 %v2148, %v2271
        %v2349 = vmax.f32 %v2150, %v2273
        %v2350 = vmax.f32 %v2158, %v2275
        %v2351 = vmax.f32 %v2166, %v2277
        %v2352 = vmax.f32 %v2165, %v2279
        %v2353 = vmax.f32 %v2167, %v2281
        %v2354 = vmax.f32 %v2175, %v2283
        %v2355 = vmax.f32 %v2183, %v2285
        %v2356 = vmax.f32 %v2182, %v2287
        %v2357 = vmax.f32 %v2184, %v2289
        %v2358 = vmax.f32 %v2192, %v2291
        %v2359 = vmax.f32 %v2200, %v2293
        %v2360 = vmax.f32 %v2199, %v2295
        %v2361 = vmax.f32 %v2201, %v2297
        %v2362 = vpack.c.bf16 %v2330, %v2330
        %v2363 = vpack.c.bf16 %v2331, %v2331
        %v2364 = vpack.c.bf16 %v2332, %v2332
        %v2365 = vpack.c.bf16 %v2333, %v2333
        %v2366 = vpack.c.bf16 %v2334, %v2334
        %v2367 = vpack.c.bf16 %v2335, %v2335
        %v2368 = vpack.c.bf16 %v2336, %v2336
        %v2369 = vpack.c.bf16 %v2337, %v2337
        %v2370 = vpack.c.bf16 %v2338, %v2338
        %v2371 = vpack.c.bf16 %v2339, %v2339
        %v2372 = vpack.c.bf16 %v2340, %v2340
        %v2373 = vpack.c.bf16 %v2341, %v2341
        %v2374 = vpack.c.bf16 %v2342, %v2342
        %v2375 = vpack.c.bf16 %v2343, %v2343
        %v2376 = vpack.c.bf16 %v2344, %v2344
        %v2377 = vpack.c.bf16 %v2345, %v2345
        %v2378 = vpack.c.bf16 %v2346, %v2346
        %v2379 = vpack.c.bf16 %v2347, %v2347
        %v2380 = vpack.c.bf16 %v2348, %v2348
        %v2381 = vpack.c.bf16 %v2349, %v2349
        %v2382 = vpack.c.bf16 %v2350, %v2350
        %v2383 = vpack.c.bf16 %v2351, %v2351
        %v2384 = vpack.c.bf16 %v2352, %v2352
        %v2385 = vpack.c.bf16 %v2353, %v2353
        %v2386 = vpack.c.bf16 %v2354, %v2354
        %v2387 = vpack.c.bf16 %v2355, %v2355
        %v2388 = vpack.c.bf16 %v2356, %v2356
        %v2389 = vpack.c.bf16 %v2357, %v2357
        %v2390 = vpack.c.bf16 %v2358, %v2358
        %v2391 = vpack.c.bf16 %v2359, %v2359
        %v2392 = vpack.c.bf16 %v2360, %v2360
        %v2393 = vpack.c.bf16 %v2361, %v2361
        %v2426 = vunpack.c.l.b16 %v2362
        %v2427 = vunpack.c.l.b16 %v2363
        %v2428 = vunpack.c.l.b16 %v2364
        %v2429 = vunpack.c.l.b16 %v2365
        %v2430 = vunpack.c.l.b16 %v2366
        %v2431 = vunpack.c.l.b16 %v2367
        %v2432 = vunpack.c.l.b16 %v2368
        %v2433 = vunpack.c.l.b16 %v2369
        %v2434 = vunpack.c.l.b16 %v2370
        %v2435 = vunpack.c.l.b16 %v2371
        %v2436 = vunpack.c.l.b16 %v2372
        %v2437 = vunpack.c.l.b16 %v2373
        %v2438 = vunpack.c.l.b16 %v2374
        %v2439 = vunpack.c.l.b16 %v2375
        %v2440 = vunpack.c.l.b16 %v2376
        %v2441 = vunpack.c.l.b16 %v2377
        %v2442 = vunpack.c.l.b16 %v2378
        %v2443 = vunpack.c.l.b16 %v2379
        %v2444 = vunpack.c.l.b16 %v2380
        %v2445 = vunpack.c.l.b16 %v2381
        %v2446 = vunpack.c.l.b16 %v2382
        %v2447 = vunpack.c.l.b16 %v2383
        %v2448 = vunpack.c.l.b16 %v2384
        %v2449 = vunpack.c.l.b16 %v2385
        %v2450 = vunpack.c.l.b16 %v2386
        %v2451 = vunpack.c.l.b16 %v2387
        %v2452 = vunpack.c.l.b16 %v2388
        %v2453 = vunpack.c.l.b16 %v2389
        %v2454 = vunpack.c.l.b16 %v2390
        %v2455 = vunpack.c.l.b16 %v2391
        %v2456 = vunpack.c.l.b16 %v2392
        %v2457 = vunpack.c.l.b16 %v2393
        %v2458 = vpack.c.b16 %v2426, %v2426
        %v2459 = vpack.c.b16 %v2427, %v2427
        %v2460 = vpack.c.b16 %v2428, %v2428
        %v2461 = vpack.c.b16 %v2429, %v2429
        %v2462 = vpack.c.b16 %v2430, %v2430
        %v2463 = vpack.c.b16 %v2431, %v2431
        %v2464 = vpack.c.b16 %v2432, %v2432
        %v2465 = vpack.c.b16 %v2433, %v2433
        %v2466 = vpack.c.b16 %v2434, %v2434
        %v2467 = vpack.c.b16 %v2435, %v2435
        %v2468 = vpack.c.b16 %v2436, %v2436
        %v2469 = vpack.c.b16 %v2437, %v2437
        %v2470 = vpack.c.b16 %v2438, %v2438
        %v2471 = vpack.c.b16 %v2439, %v2439
        %v2472 = vpack.c.b16 %v2440, %v2440
        %v2473 = vpack.c.b16 %v2441, %v2441
        %v2474 = vpack.c.b16 %v2442, %v2442
        %v2475 = vpack.c.b16 %v2443, %v2443
        %v2476 = vpack.c.b16 %v2444, %v2444
        %v2477 = vpack.c.b16 %v2445, %v2445
        %v2478 = vpack.c.b16 %v2446, %v2446
        %v2479 = vpack.c.b16 %v2447, %v2447
        %v2480 = vpack.c.b16 %v2448, %v2448
        %v2481 = vpack.c.b16 %v2449, %v2449
        %v2482 = vpack.c.b16 %v2450, %v2450
        %v2483 = vpack.c.b16 %v2451, %v2451
        %v2484 = vpack.c.b16 %v2452, %v2452
        %v2485 = vpack.c.b16 %v2453, %v2453
        %v2486 = vpack.c.b16 %v2454, %v2454
        %v2487 = vpack.c.b16 %v2455, %v2455
        %v2488 = vpack.c.b16 %v2456, %v2456
        %v2489 = vpack.c.b16 %v2457, %v2457
        %v2490 = vunpack.c.l.b16 %v2458
        %v2491 = vunpack.c.l.b16 %v2459
        %v2492 = vunpack.c.l.b16 %v2460
        %v2493 = vunpack.c.l.b16 %v2461
        %v2494 = vunpack.c.l.b16 %v2462
        %v2495 = vunpack.c.l.b16 %v2463
        %v2496 = vunpack.c.l.b16 %v2464
        %v2497 = vunpack.c.l.b16 %v2465
        %v2498 = vunpack.c.l.b16 %v2466
        %v2499 = vunpack.c.l.b16 %v2467
        %v2500 = vunpack.c.l.b16 %v2468
        %v2501 = vunpack.c.l.b16 %v2469
        %v2502 = vunpack.c.l.b16 %v2470
        %v2503 = vunpack.c.l.b16 %v2471
        %v2504 = vunpack.c.l.b16 %v2472
        %v2505 = vunpack.c.l.b16 %v2473
        %v2506 = vunpack.c.l.b16 %v2474
        %v2507 = vunpack.c.l.b16 %v2475
        %v2508 = vunpack.c.l.b16 %v2476
        %v2509 = vunpack.c.l.b16 %v2477
        %v2510 = vunpack.c.l.b16 %v2478
        %v2511 = vunpack.c.l.b16 %v2479
        %v2512 = vunpack.c.l.b16 %v2480
        %v2513 = vunpack.c.l.b16 %v2481
        %v2514 = vunpack.c.l.b16 %v2482
        %v2515 = vunpack.c.l.b16 %v2483
        %v2516 = vunpack.c.l.b16 %v2484
        %v2517 = vunpack.c.l.b16 %v2485
        %v2518 = vunpack.c.l.b16 %v2486
        %v2519 = vunpack.c.l.b16 %v2487
        %v2520 = vunpack.c.l.b16 %v2488
        %v2521 = vunpack.c.l.b16 %v2489
        %v2522 = vrot.slane %v2491, 7
        %vm2523 = vcmask 1041409
        %v2524 = vsel %vm2523, %v2522, %v2490
        %v2525 = vrot.slane %v2492, 6
        %vm2526 = vcmask 1042434
        %v2527 = vsel %vm2526, %v2525, %v2524
        %v2528 = vrot.slane %v2493, 5
        %vm2529 = vcmask 1043459
        %v2530 = vsel %vm2529, %v2528, %v2527
        %v2531 = vrot.slane %v2494, 4
        %vm2532 = vcmask 1044484
        %v2533 = vsel %vm2532, %v2531, %v2530
        %v2534 = vrot.slane %v2495, 3
        %vm2535 = vcmask 1045509
        %v2536 = vsel %vm2535, %v2534, %v2533
        %v2537 = vrot.slane %v2496, 2
        %vm2538 = vcmask 1046534
        %v2539 = vsel %vm2538, %v2537, %v2536
        %v2540 = vrot.slane %v2497, 1
        %vm2541 = vcmask 1047559
        %v2542 = vsel %vm2541, %v2540, %v2539
        %v2543 = vrot.slane %v2499, 7
        %v2544 = vsel %vm2523, %v2543, %v2498
        %v2545 = vrot.slane %v2500, 6
        %v2546 = vsel %vm2526, %v2545, %v2544
        %v2547 = vrot.slane %v2501, 5
        %v2548 = vsel %vm2529, %v2547, %v2546
        %v2549 = vrot.slane %v2502, 4
        %v2550 = vsel %vm2532, %v2549, %v2548
        %v2551 = vrot.slane %v2503, 3
        %v2552 = vsel %vm2535, %v2551, %v2550
        %v2553 = vrot.slane %v2504, 2
        %v2554 = vsel %vm2538, %v2553, %v2552
        %v2555 = vrot.slane %v2505, 1
        %v2556 = vsel %vm2541, %v2555, %v2554
        %v2557 = vrot.slane %v2507, 7
        %v2558 = vsel %vm2523, %v2557, %v2506
        %v2559 = vrot.slane %v2508, 6
        %v2560 = vsel %vm2526, %v2559, %v2558
        %v2561 = vrot.slane %v2509, 5
        %v2562 = vsel %vm2529, %v2561, %v2560
        %v2563 = vrot.slane %v2510, 4
        %v2564 = vsel %vm2532, %v2563, %v2562
        %v2565 = vrot.slane %v2511, 3
        %v2566 = vsel %vm2535, %v2565, %v2564
        %v2567 = vrot.slane %v2512, 2
        %v2568 = vsel %vm2538, %v2567, %v2566
        %v2569 = vrot.slane %v2513, 1
        %v2570 = vsel %vm2541, %v2569, %v2568
        %v2571 = vrot.slane %v2515, 7
        %v2572 = vsel %vm2523, %v2571, %v2514
        %v2573 = vrot.slane %v2516, 6
        %v2574 = vsel %vm2526, %v2573, %v2572
        %v2575 = vrot.slane %v2517, 5
        %v2576 = vsel %vm2529, %v2575, %v2574
        %v2577 = vrot.slane %v2518, 4
        %v2578 = vsel %vm2532, %v2577, %v2576
        %v2579 = vrot.slane %v2519, 3
        %v2580 = vsel %vm2535, %v2579, %v2578
        %v2581 = vrot.slane %v2520, 2
        %v2582 = vsel %vm2538, %v2581, %v2580
        %v2583 = vrot.slane %v2521, 1
        %v2584 = vsel %vm2541, %v2583, %v2582
        %v2585 = vpack.c.b16 %v2542, %v2542
        %v2586 = vpack.c.b16 %v2556, %v2556
        %v2587 = vpack.c.b16 %v2570, %v2570
        %v2588 = vpack.c.b16 %v2584, %v2584
        %vm2593 = vcmask 519168
        %2594 = vst.msk [vmem:[%s239] sm:$0xf] %vm2593, %v2585
        %2595 = vst.msk [vmem:[%s239 + $0x4] sm:$0xf] %vm2593, %v2586
        %2596 = vst.msk [vmem:[%s239 + $0x8] sm:$0xf] %vm2593, %v2587
        %2597 = vst.msk [vmem:[%s239 + $0xc] sm:$0xf] %vm2593, %v2588
        %s2598 = sand.u32 %s138, 1
        %s2599 = scalar_lea.sflag [#allocation3], %s2598
        %s2600 = sand.u32 %s138, 1
        %s2601 = smul.addr %s2600, 16
        %s2602 = scalar_lea.vmem [#allocation2], %s2601
        // Predicated region
        $region37: #{tpu_custom_call.1} parent=35 // pred_check
          %p2603 = pneg %p148
        $region38: #{tpu_custom_call.1} parent=35 // pred_check_branch
          %2605 = sbr.rel (%p2603) target = $region40
        $region39: #{tpu_custom_call.1} parent=35 // pred_region
          %s2606 = smul.u32 4, %s23
          %s2608 = ssub.s32 256, 256
          %2609 = vsyncadd %s2599, %s2608
          %s2610 = smul.addr %s22, 8
          %s2611 = sadd.s32 %s2606, %s2610
          %s2612 = smul.addr %s2611, 64
          %s2613 = scalar_lea.hbm %s4, %s2612
          %s2614 = sshll.u32 %s2602, 4
          %s2615 = int_to_ptr.vmem [resolvable:$true] %s2614
          %2620 = dma.vmem_to_hbm [thread:$0]  %s2615, 256, %s2613, %s2599, 64, 64, 4
        $region40: #{tpu_custom_call.1} parent=35 // pred_fallthru
          _
      $region36: #{tpu_custom_call.1} parent=5 // pred_fallthru
        _
      %p2621 = scmp.le.s32.totalorder 2, %s13
      // Predicated region
      $region41: #{tpu_custom_call.1} parent=5 // pred_check
        %p2622 = pneg %p2621
      $region42: #{tpu_custom_call.1} parent=5 // pred_check_branch
        %2624 = sbr.rel (%p2622) target = $region44
      $region43: #{tpu_custom_call.1} parent=5 // pred_region
        %s2625 = ssub.s32 %s13, 2
        // Predicated region
        $region45: #{tpu_custom_call.1} parent=43 // pred_check
          %p2626 = pneg %p154
        $region46: #{tpu_custom_call.1} parent=43 // pred_check_branch
          %2628 = sbr.rel (%p2626) target = $region48
        $region47: #{tpu_custom_call.1} parent=43 // pred_region
          %s2629 = sand.u32 %s139, 1
          %s2630 = scalar_lea.sflag [#allocation3], %s2629
          %s2631 = sand.u32 %s139, 1
          %s2632 = smul.addr %s2631, 16
          %s2633 = scalar_lea.vmem [#allocation2], %s2632
          %2634 = dma.done %s2630, 256
        $region48: #{tpu_custom_call.1} parent=43 // pred_fallthru
          _
      $region44: #{tpu_custom_call.1} parent=5 // pred_fallthru
        _
    $region6: #{tpu_custom_call.1} parent=1 // loop_footer
      %s17 = sadd.s32 1, %s13
    $region7: #{tpu_custom_call.1} parent=1 // loop_footer_branch
      %12 = sbr.rel target = $region3
    $region8: #{tpu_custom_call.1} parent=1 // loop_exit
      _
    %2635 = vsyncpa [#allocation3], 1
    %s2636 = scalar_lea.sflag [#allocation3], 1
    %2637 = vsyncpa %s2636, 1

</llo_original>
